<compile_context>
chip_gen: v5e
topology: v5e:2x2
jax: 0.10.0
libtpu: 0.0.40
codegen_flags: <defaults>
</compile_context>

<pallas_src>
import math
import functools

import jax
import jax.numpy as jnp
from jax.experimental import pallas as pl
from jax.experimental.pallas import tpu as pltpu


# Set True to feed the MXU bf16 operands (f32 accumulation): ~2x MXU throughput
# and halved weight DMA on v6e/v7x, but not bit-identical to the f32 reference.
USE_BF16_MATMUL = False


# ----------------------------------------------------------------------------
# helpers
# ----------------------------------------------------------------------------

def _gelu(x):
    # matches the PyTorch tanh-approx gelu in the reference module
    return 0.5 * x * (1.0 + jnp.tanh(
        math.sqrt(2.0 / math.pi) * (x + 0.044715 * x ** 3)))


def _pick_tile(dim, target, multiple):
    """Largest tile <= target that divides `dim` and is a multiple of
    `multiple`; falls back to the full dim (always legal for BlockSpec)."""
    if dim <= target:
        return dim
    t = (target // multiple) * multiple
    while t >= multiple:
        if dim % t == 0:
            return t
        t -= multiple
    return dim


@functools.lru_cache(maxsize=None)
def _tpu_config():
    """Per-generation tile targets and scoped-VMEM budget."""
    kind = ""
    try:
        kind = jax.devices()[0].device_kind.lower()
    except Exception:
        pass
    if "v7" in kind:
        # v7x: 64 MiB physical VMEM per TensorCore -> keep the scoped cap modest
        cfg = dict(tm=512, tn=256, tk=512, vmem=44 * 2 ** 20)
    elif "v6" in kind:
        cfg = dict(tm=1024, tn=256, tk=512, vmem=64 * 2 ** 20)
    elif "v5 lite" in kind or "v5e" in kind or "v5lite" in kind:
        # v5e: 128-wide MXU passes and a single vst slot -> narrower tn, deep tm
        cfg = dict(tm=1024, tn=128, tk=512, vmem=64 * 2 ** 20)
    elif "v5" in kind or "v4" in kind:
        cfg = dict(tm=1024, tn=256, tk=512, vmem=64 * 2 ** 20)
    else:
        # unknown generation: assume the smallest VMEM (v7x-like)
        cfg = dict(tm=512, tn=256, tk=512, vmem=40 * 2 ** 20)
    try:
        cap = int(pltpu.get_tpu_info().vmem_capacity_bytes)
        cfg["vmem"] = min(cfg["vmem"], max(16 * 2 ** 20, int(cap * 0.7)))
    except Exception:
        pass
    return cfg


def _linear_vmem_bytes(tm, tn, tk, K, has_ln, has_res, single_k):
    """Rough per-step VMEM footprint (double-buffered blocks + scratch)."""
    b = 4
    est = 2 * tm * tk * b + 2 * tk * tn * b + 2 * tn * b + 2 * tm * tn * b
    if has_ln:
        est += 4 * tk * b + tm * K * b          # gamma/beta + LN cache
    if has_res:
        est += 2 * tm * tn * b
    if not single_k:
        est += tm * tn * b                      # f32 accumulator
    return est


# ----------------------------------------------------------------------------
# fused linear kernels:  out = [gelu]( [LN](x) @ W + b ) [+ residual]
# ----------------------------------------------------------------------------

def _linear_ln_kernel(x_ref, w_ref, b_ref, g_ref, bt_ref, *rest,
                      eps, activation, has_res, use_bf16):
    # grid = (M//tm, N//tn); full K per step, so no accumulator is needed.
    if has_res:
        r_ref, o_ref, xn_ref = rest
    else:
        (o_ref, xn_ref) = rest
        r_ref = None

    # LayerNorm computed once per M-tile (at j == 0) into a VMEM cache and
    # reused for all N-tiles.  Axis 1 must be "arbitrary" for correctness.
    @pl.when(pl.program_id(1) == 0)
    def _ln():
        x = x_ref[...].astype(jnp.float32)
        u = jnp.mean(x, axis=-1, keepdims=True)
        s = jnp.mean((x - u) ** 2, axis=-1, keepdims=True)
        xn = (x - u) * jax.lax.rsqrt(s + eps)
        xn_ref[...] = (g_ref[...].astype(jnp.float32) * xn
                       + bt_ref[...].astype(jnp.float32))

    mmt = jnp.bfloat16 if use_bf16 else jnp.float32
    out = jnp.dot(xn_ref[...].astype(mmt), w_ref[...].astype(mmt),
                  preferred_element_type=jnp.float32)
    out = out + b_ref[...].astype(jnp.float32)
    if activation == "gelu":
        out = _gelu(out)
    if has_res:
        out = out + r_ref[...].astype(jnp.float32)
    o_ref[...] = out.astype(o_ref.dtype)


def _linear_direct_kernel(x_ref, w_ref, b_ref, *rest,
                          activation, has_res, use_bf16):
    # grid = (M//tm, N//tn); single K step -> no accumulator round-trip.
    if has_res:
        r_ref, o_ref = rest
    else:
        (o_ref,) = rest
        r_ref = None
    mmt = jnp.bfloat16 if use_bf16 else jnp.float32
    out = jnp.dot(x_ref[...].astype(mmt), w_ref[...].astype(mmt),
                  preferred_element_type=jnp.float32)
    out = out + b_ref[...].astype(jnp.float32)
    if activation == "gelu":
        out = _gelu(out)
    if has_res:
        out = out + r_ref[...].astype(jnp.float32)
    o_ref[...] = out.astype(o_ref.dtype)


def _linear_acc_kernel(x_ref, w_ref, b_ref, *rest,
                       activation, has_res, use_bf16):
    # grid = (M//tm, N//tn, K//tk); classic accumulator matmul.
    if has_res:
        r_ref, o_ref, acc_ref = rest
    else:
        (o_ref, acc_ref) = rest
        r_ref = None
    k = pl.program_id(2)
    nk = pl.num_programs(2)

    @pl.when(k == 0)
    def _init():
        acc_ref[...] = jnp.zeros_like(acc_ref)

    mmt = jnp.bfloat16 if use_bf16 else jnp.float32
    acc_ref[...] += jnp.dot(x_ref[...].astype(mmt), w_ref[...].astype(mmt),
                            preferred_element_type=jnp.float32)

    @pl.when(k == nk - 1)
    def _fin():
        out = acc_ref[...] + b_ref[...].astype(jnp.float32)
        if activation == "gelu":
            out = _gelu(out)
        if has_res:
            out = out + r_ref[...].astype(jnp.float32)
        o_ref[...] = out.astype(o_ref.dtype)


def fused_linear(x2d, w, b, *, gamma=None, beta=None, eps=1e-5,
                 activation=None, residual=None, use_bf16=USE_BF16_MATMUL):
    """Torch Conv1D semantics: (M,K) @ (K,N) + (N,), with optional fused
    layernorm on the input, gelu on the output and residual add."""
    M, K = x2d.shape
    K2, N = w.shape
    assert K == K2
    has_ln = gamma is not None
    has_res = residual is not None
    cfg = _tpu_config()

    tm_ = _pick_tile(M, cfg["tm"], 8)
    tn_ = _pick_tile(N, cfg["tn"], 128)
    # LN needs the full row of K inside one tile.
    tk_ = K if has_ln else _pick_tile(K, cfg["tk"], 128)

    # shrink tm until the double-buffered tiles fit the per-generation budget
    budget = int(cfg["vmem"] * 0.85)
    for _ in range(8):
        single_k = (tk_ == K)
        if _linear_vmem_bytes(tm_, tn_, tk_, K, has_ln, has_res,
                              single_k) <= budget:
            break
        new_tm = _pick_tile(M, max(8, tm_ // 2), 8)
        if new_tm == tm_:
            break
        tm_ = new_tm
    single_k = (tk_ == K)

    flops = 2 * M * N * K + 2 * M * N
    trans = (M * N if activation == "gelu" else 0) + (M if has_ln else 0)
    bytes_acc = 4 * (M * K + K * N + N + M * N
                     + (M * N if has_res else 0) + (2 * K if has_ln else 0))
    cost = pl.CostEstimate(flops=int(flops), transcendentals=int(trans),
                           bytes_accessed=int(bytes_acc))

    b2 = b.reshape(1, N).astype(jnp.float32)

    if has_ln:
        grid = (M // tm_, N // tn_)
        in_specs = [pl.BlockSpec((tm_, K), lambda i, j: (i, 0)),
                    pl.BlockSpec((K, tn_), lambda i, j: (0, j)),
                    pl.BlockSpec((1, tn_), lambda i, j: (0, j)),
                    pl.BlockSpec((1, K), lambda i, j: (0, 0)),
                    pl.BlockSpec((1, K), lambda i, j: (0, 0))]
        inputs = [x2d, w, b2,
                  gamma.reshape(1, K).astype(jnp.float32),
                  beta.reshape(1, K).astype(jnp.float32)]
        if has_res:
            in_specs.append(pl.BlockSpec((tm_, tn_), lambda i, j: (i, j)))
            inputs.append(residual)
        kernel = functools.partial(_linear_ln_kernel, eps=eps,
                                   activation=activation, has_res=has_res,
                                   use_bf16=use_bf16)
        out_spec = pl.BlockSpec((tm_, tn_), lambda i, j: (i, j))
        scratch = [pltpu.VMEM((tm_, K), jnp.float32)]       # LN(x) cache
        # axis 1 stays "arbitrary": the LN cache is filled at j == 0 and
        # reused for j > 0, so the j axis must not be sharded across cores.
        sems = ("parallel", "arbitrary")
    elif single_k:
        grid = (M // tm_, N // tn_)
        in_specs = [pl.BlockSpec((tm_, K), lambda i, j: (i, 0)),
                    pl.BlockSpec((K, tn_), lambda i, j: (0, j)),
                    pl.BlockSpec((1, tn_), lambda i, j: (0, j))]
        inputs = [x2d, w, b2]
        if has_res:
            in_specs.append(pl.BlockSpec((tm_, tn_), lambda i, j: (i, j)))
            inputs.append(residual)
        kernel = functools.partial(_linear_direct_kernel,
                                   activation=activation, has_res=has_res,
                                   use_bf16=use_bf16)
        out_spec = pl.BlockSpec((tm_, tn_), lambda i, j: (i, j))
        scratch = []
        sems = ("parallel", "parallel")
    else:
        grid = (M // tm_, N // tn_, K // tk_)
        in_specs = [pl.BlockSpec((tm_, tk_), lambda i, j, k: (i, k)),
                    pl.BlockSpec((tk_, tn_), lambda i, j, k: (k, j)),
                    pl.BlockSpec((1, tn_), lambda i, j, k: (0, j))]
        inputs = [x2d, w, b2]
        if has_res:
            in_specs.append(pl.BlockSpec((tm_, tn_), lambda i, j, k: (i, j)))
            inputs.append(residual)
        kernel = functools.partial(_linear_acc_kernel,
                                   activation=activation, has_res=has_res,
                                   use_bf16=use_bf16)
        out_spec = pl.BlockSpec((tm_, tn_), lambda i, j, k: (i, j))
        scratch = [pltpu.VMEM((tm_, tn_), jnp.float32)]
        sems = ("parallel", "parallel", "arbitrary")

    return pl.pallas_call(
        kernel,
        out_shape=jax.ShapeDtypeStruct((M, N), x2d.dtype),
        grid=grid,
        in_specs=in_specs,
        out_specs=out_spec,
        scratch_shapes=scratch,
        compiler_params=pltpu.CompilerParams(
            dimension_semantics=sems,
            vmem_limit_bytes=int(cfg["vmem"])),
        cost_estimate=cost,
    )(*inputs)


# ----------------------------------------------------------------------------
# flash-style causal multi-head attention on the packed (B, T, 3E) qkv
# ----------------------------------------------------------------------------

def _flash_attn_kernel(qsrc_ref, kvsrc_ref, o_ref, m_sc, l_sc, acc_sc,
                       *, n_head, scale, tq, tkv, use_bf16):
    # qsrc_ref: (tq, 3E) packed q|k|v for the current q tile (resident over ki)
    # kvsrc_ref: (tkv, 3E) packed q|k|v for the current kv tile
    qi = pl.program_id(1)
    ki = pl.program_id(2)
    nkv = pl.num_programs(2)

    E = o_ref.shape[-1]
    d = E // n_head
    mmt = jnp.bfloat16 if use_bf16 else jnp.float32

    @pl.when(ki == 0)
    def _init():
        m_sc[...] = jnp.full_like(m_sc, -jnp.inf)
        l_sc[...] = jnp.zeros_like(l_sc)
        acc_sc[...] = jnp.zeros_like(acc_sc)

    # Skip kv tiles that are entirely above the causal diagonal.
    @pl.when(ki * tkv <= qi * tq + (tq - 1))
    def _compute():
        q_pos = qi * tq + jax.lax.broadcasted_iota(jnp.int32, (tq, tkv), 0)
        k_pos = ki * tkv + jax.lax.broadcasted_iota(jnp.int32, (tq, tkv), 1)
        causal = k_pos <= q_pos
        inv_scale = (1.0 / math.sqrt(d)) if scale else 1.0

        for h in range(n_head):
            # TODO(synk): when d < 128, process adjacent head pairs so these
            # lane slices / stores are 128-lane aligned.
            qh = qsrc_ref[:, h * d:(h + 1) * d].astype(jnp.float32)
            if scale:
                qh = qh * inv_scale          # scale (tq,d), not the (tq,tkv) logits
            kh = kvsrc_ref[:, E + h * d:E + (h + 1) * d]
            vh = kvsrc_ref[:, 2 * E + h * d:2 * E + (h + 1) * d]

            s = jax.lax.dot_general(qh.astype(mmt), kh.astype(mmt),
                                    (((1,), (1,)), ((), ())),
                                    preferred_element_type=jnp.float32)
            s = jnp.where(causal, s, jnp.float32(-1e10))   # == w*b - 1e10*(1-b)

            m_prev = m_sc[h]                                       # (tq, 1)
            m_new = jnp.maximum(m_prev, jnp.max(s, axis=-1, keepdims=True))
            alpha = jnp.exp(m_prev - m_new)
            p = jnp.exp(s - m_new)
            l_sc[h] = alpha * l_sc[h] + jnp.sum(p, axis=-1, keepdims=True)
            pv = jnp.dot(p.astype(mmt), vh.astype(mmt),
                         preferred_element_type=jnp.float32)
            acc_sc[h] = alpha * acc_sc[h] + pv
            m_sc[h] = m_new

    @pl.when(ki == nkv - 1)
    def _finalize():
        for h in range(n_head):
            inv_l = pl.reciprocal(l_sc[h], approx=True)
            o_ref[:, h * d:(h + 1) * d] = (acc_sc[h] * inv_l).astype(o_ref.dtype)


def attention(qkv, *, n_head, scale=True, use_bf16=USE_BF16_MATMUL):
    """qkv: (B, T, 3E) packed q|k|v -> (B, T, E) causal attention output."""
    B, T, C3 = qkv.shape
    E = C3 // 3
    d = E // n_head
    cfg = _tpu_config()

    tq = _pick_tile(T, 256, 8)
    tkv = _pick_tile(T, 256, 8)

    def vmem_est(tq_, tkv_):
        return 4 * (2 * tq_ * C3 + 2 * tkv_ * C3 + 2 * tq_ * E
                    + n_head * tq_ * (d + 2))

    budget = int(cfg["vmem"] * 0.85)
    for _ in range(6):
        if vmem_est(tq, tkv) <= budget:
            break
        new_tq = _pick_tile(T, max(8, tq // 2), 8)
        new_tkv = _pick_tile(T, max(8, tkv // 2), 8)
        if new_tq == tq and new_tkv == tkv:
            break
        tq, tkv = new_tq, new_tkv

    grid = (B, T // tq, T // tkv)

    cost = pl.CostEstimate(
        flops=int(4 * B * T * T * E),
        transcendentals=int(B * n_head * T * T),
        bytes_accessed=int(4 * (2 * B * T * C3 + B * T * E)))

    return pl.pallas_call(
        functools.partial(_flash_attn_kernel, n_head=n_head, scale=scale,
                          tq=tq, tkv=tkv, use_bf16=use_bf16),
        out_shape=jax.ShapeDtypeStruct((B, T, E), qkv.dtype),
        grid=grid,
        in_specs=[
            # q-view of the packed qkv: block index constant over ki -> resident
            pl.BlockSpec((None, tq, C3), lambda b, qi, ki: (b, qi, 0)),
            # kv-view of the packed qkv
            pl.BlockSpec((None, tkv, C3), lambda b, qi, ki: (b, ki, 0)),
        ],
        out_specs=pl.BlockSpec((None, tq, E), lambda b, qi, ki: (b, qi, 0)),
        scratch_shapes=[
            pltpu.VMEM((n_head, tq, 1), jnp.float32),   # running max m
            pltpu.VMEM((n_head, tq, 1), jnp.float32),   # running denom l
            pltpu.VMEM((n_head, tq, d), jnp.float32),   # running numerator
        ],
        compiler_params=pltpu.CompilerParams(
            dimension_semantics=("parallel", "parallel", "arbitrary"),
            vmem_limit_bytes=int(cfg["vmem"])),
        cost_estimate=cost,
    )(qkv, qkv)


# ----------------------------------------------------------------------------
# Block forward (matches the PyTorch Block module)
# ----------------------------------------------------------------------------

def block_forward(p, x, *, n_head, eps, scale=True):
    B, T, E = x.shape
    d = E // n_head
    x2 = x.reshape(B * T, E)

    # ln_1 fused into c_attn
    qkv = fused_linear(x2, p["attn_w"], p["attn_b"],
                       gamma=p["ln1_g"], beta=p["ln1_b"], eps=eps)
    qkv3 = qkv.reshape(B, T, 3 * E)

    # flash-style causal multi-head attention
    a = attention(qkv3, n_head=n_head, scale=scale)               # (B, T, E)

    # c_proj + residual fused
    # TODO(synk): fold c_proj (and residual) into the attention epilogue to
    # save one (B,T,E) HBM round-trip.
    x2 = fused_linear(a.reshape(B * T, E), p["proj_w"], p["proj_b"],
                      residual=x2)

    # MLP: ln_2 + c_fc + gelu fused, then c_proj + residual fused
    h = fused_linear(x2, p["fc_w"], p["fc_b"],
                     gamma=p["ln2_g"], beta=p["ln2_b"], eps=eps,
                     activation="gelu")
    x2 = fused_linear(h, p["mproj_w"], p["mproj_b"], residual=x2)

    # present = stack((key.transpose(-2,-1), value)) -- pure layout glue
    # TODO(synk): emit present k/v directly from the attention kernel to avoid
    # XLA re-reading 2/3 of qkv for this transpose.
    k_ = qkv3[..., E:2 * E].reshape(B, T, n_head, d).transpose(0, 2, 1, 3)
    v_ = qkv3[..., 2 * E:].reshape(B, T, n_head, d).transpose(0, 2, 1, 3)
    present = jnp.stack([k_, v_])

    return x2.reshape(B, T, E), present


# ----------------------------------------------------------------------------
# pure-JAX reference (mirrors the PyTorch module exactly) and params
# ----------------------------------------------------------------------------

def block_reference(p, x, *, n_head, eps, scale=True):
    B, T, E = x.shape
    H, d = n_head, E // n_head

    def ln(v, g, b):
        u = v.mean(-1, keepdims=True)
        s = ((v - u) ** 2).mean(-1, keepdims=True)
        return g * ((v - u) / jnp.sqrt(s + eps)) + b

    qkv = ln(x, p["ln1_g"], p["ln1_b"]) @ p["attn_w"] + p["attn_b"]
    q, k, v = jnp.split(qkv, 3, axis=-1)
    q = q.reshape(B, T, H, d).transpose(0, 2, 1, 3)
    k = k.reshape(B, T, H, d).transpose(0, 2, 1, 3)
    v = v.reshape(B, T, H, d).transpose(0, 2, 1, 3)
    w = jnp.einsum("bhqd,bhkd->bhqk", q, k)
    if scale:
        w = w / math.sqrt(d)
    mask = jnp.tril(jnp.ones((T, T), jnp.float32))
    w = w * mask - 1e10 * (1.0 - mask)
    w = jax.nn.softmax(w, axis=-1)
    a = jnp.einsum("bhqk,bhkd->bhqd", w, v)
    a = a.transpose(0, 2, 1, 3).reshape(B, T, E)
    a = a @ p["proj_w"] + p["proj_b"]
    x = x + a
    h = ln(x, p["ln2_g"], p["ln2_b"]) @ p["fc_w"] + p["fc_b"]
    h = 0.5 * h * (1.0 + jnp.tanh(math.sqrt(2.0 / math.pi)
                                  * (h + 0.044715 * h ** 3)))
    m = h @ p["mproj_w"] + p["mproj_b"]
    return x + m


def init_block_params(key, n_embd):
    E = n_embd
    ks = jax.random.split(key, 4)
    nrm = lambda k, shape: (0.02 * jax.random.normal(k, shape)).astype(jnp.float32)
    return {
        "ln1_g": jnp.ones((E,), jnp.float32),
        "ln1_b": jnp.zeros((E,), jnp.float32),
        "attn_w": nrm(ks[0], (E, 3 * E)),      # Conv1D(3E, E)
        "attn_b": jnp.zeros((3 * E,), jnp.float32),
        "proj_w": nrm(ks[1], (E, E)),          # Conv1D(E, E)
        "proj_b": jnp.zeros((E,), jnp.float32),
        "ln2_g": jnp.ones((E,), jnp.float32),
        "ln2_b": jnp.zeros((E,), jnp.float32),
        "fc_w": nrm(ks[2], (E, 4 * E)),        # Conv1D(4E, E)
        "fc_b": jnp.zeros((4 * E,), jnp.float32),
        "mproj_w": nrm(ks[3], (4 * E, E)),     # Conv1D(E, 4E)
        "mproj_b": jnp.zeros((E,), jnp.float32),
    }


# ----------------------------------------------------------------------------
# Main
# ----------------------------------------------------------------------------

if __name__ == "__main__":
    B, T, E, H = 2, 8, 32, 4
    eps = 1e-5

    key = jax.random.PRNGKey(0)
    k_x, k_p = jax.random.split(key)
    x = jax.random.normal(k_x, (B, T, E), dtype=jnp.float32)
    params = init_block_params(k_p, E)

    fwd = jax.jit(functools.partial(block_forward, n_head=H, eps=eps, scale=True))
    out, present = fwd(params, x)
    out = jax.block_until_ready(out)

    assert out.shape == (B, T, E), out.shape
    assert present.shape == (2, B, H, T, E // H), present.shape
    assert bool(jnp.all(jnp.isfinite(out)))

    ref = block_reference(params, x, n_head=H, eps=eps, scale=True)
    assert bool(jnp.allclose(out, ref, rtol=1e-2, atol=1e-2)), \
        float(jnp.max(jnp.abs(out - ref)))

    print("KERNEL_OK")
</pallas_src>

<mosaic_0001>
module attributes {stable_mosaic.version = 11 : i64} {
  func.func @_linear_direct_kernel(%arg0: i32, %arg1: i32, %arg2: memref<16x32xf32, #tpu.memory_space<vmem>>, %arg3: memref<32x32xf32, #tpu.memory_space<vmem>>, %arg4: memref<1x32xf32, #tpu.memory_space<vmem>>, %arg5: memref<16x32xf32, #tpu.memory_space<vmem>>, %arg6: memref<16x32xf32, #tpu.memory_space<vmem>>) attributes {dimension_semantics = [#tpu.dimension_semantics<parallel>, #tpu.dimension_semantics<parallel>], iteration_bounds = array<i64: 1, 1>, scalar_prefetch = 0 : i64, scratch_operands = 0 : i64, tpu.core_type = #tpu.core_type<tc>, window_params = [{transform_indices = @transform_0, window_bounds = array<i64: 16, 32>}, {transform_indices = @transform_1, window_bounds = array<i64: 32, 32>}, {transform_indices = @transform_2, window_bounds = array<i64: 1, 32>}, {transform_indices = @transform_3, window_bounds = array<i64: 16, 32>}, {transform_indices = @transform_4, window_bounds = array<i64: 16, 32>}]} {
    %c0 = arith.constant 0 : index
    %c0_0 = arith.constant 0 : index
    %0 = vector.load %arg2[%c0, %c0_0] : memref<16x32xf32, #tpu.memory_space<vmem>>, vector<16x32xf32>
    %c0_1 = arith.constant 0 : index
    %c0_2 = arith.constant 0 : index
    %1 = vector.load %arg3[%c0_1, %c0_2] : memref<32x32xf32, #tpu.memory_space<vmem>>, vector<32x32xf32>
    %cst = arith.constant dense<0.000000e+00> : vector<16x32xf32>
    %2 = tpu.matmul %0, %1, %cst {dimension_numbers = #tpu.dot_dimension_numbers<[1], [0], [0], [1], [0, 0, 1, 1], [], []>} : vector<16x32xf32>, vector<32x32xf32>, vector<16x32xf32> -> vector<16x32xf32>
    %c0_3 = arith.constant 0 : index
    %c0_4 = arith.constant 0 : index
    %3 = vector.load %arg4[%c0_3, %c0_4] : memref<1x32xf32, #tpu.memory_space<vmem>>, vector<1x32xf32>
    %4 = vector.broadcast %3 : vector<1x32xf32> to vector<16x32xf32>
    %5 = arith.addf %2, %4 : vector<16x32xf32>
    %c0_5 = arith.constant 0 : index
    %c0_6 = arith.constant 0 : index
    %6 = vector.load %arg5[%c0_5, %c0_6] : memref<16x32xf32, #tpu.memory_space<vmem>>, vector<16x32xf32>
    %7 = arith.addf %5, %6 : vector<16x32xf32>
    %c0_7 = arith.constant 0 : index
    %c0_8 = arith.constant 0 : index
    %8 = vector.load %arg6[%c0_7, %c0_8] : memref<16x32xf32, #tpu.memory_space<vmem>>, vector<16x32xf32>
    tpu.vector_store %arg6[%c0_7, %c0_8], %7 {strides = array<i32>} : memref<16x32xf32, #tpu.memory_space<vmem>>, vector<16x32xf32>,
    return
  }
  func.func @transform_0(%arg0: i32, %arg1: i32) -> (i32, i32) {
    %c0_i32 = arith.constant 0 : i32
    %c0_i32_0 = arith.constant 0 : i32
    return %arg0, %c0_i32 : i32, i32
  }
  func.func @transform_1(%arg0: i32, %arg1: i32) -> (i32, i32) {
    %c0_i32 = arith.constant 0 : i32
    %c0_i32_0 = arith.constant 0 : i32
    return %c0_i32, %arg1 : i32, i32
  }
  func.func @transform_2(%arg0: i32, %arg1: i32) -> (i32, i32) {
    %c0_i32 = arith.constant 0 : i32
    %c0_i32_0 = arith.constant 0 : i32
    return %c0_i32, %arg1 : i32, i32
  }
  func.func @transform_3(%arg0: i32, %arg1: i32) -> (i32, i32) {
    %c0_i32 = arith.constant 0 : i32
    return %arg0, %arg1 : i32, i32
  }
  func.func @transform_4(%arg0: i32, %arg1: i32) -> (i32, i32) {
    %c0_i32 = arith.constant 0 : i32
    return %arg0, %arg1 : i32, i32
  }
}

module attributes {stable_mosaic.version = 11 : i64} {
  func.func @_linear_ln_kernel(%arg0: i32, %arg1: i32, %arg2: memref<16x32xf32, #tpu.memory_space<vmem>>, %arg3: memref<32x96xf32, #tpu.memory_space<vmem>>, %arg4: memref<1x96xf32, #tpu.memory_space<vmem>>, %arg5: memref<1x32xf32, #tpu.memory_space<vmem>>, %arg6: memref<1x32xf32, #tpu.memory_space<vmem>>, %arg7: memref<16x96xf32, #tpu.memory_space<vmem>>, %arg8: memref<16x32xf32, #tpu.memory_space<vmem>>) attributes {dimension_semantics = [#tpu.dimension_semantics<parallel>, #tpu.dimension_semantics<arbitrary>], iteration_bounds = array<i64: 1, 1>, scalar_prefetch = 0 : i64, scratch_operands = 1 : i64, tpu.core_type = #tpu.core_type<tc>, window_params = [{transform_indices = @transform_0, window_bounds = array<i64: 16, 32>}, {transform_indices = @transform_1, window_bounds = array<i64: 32, 96>}, {transform_indices = @transform_2, window_bounds = array<i64: 1, 96>}, {pipeline_mode = #tpu.pipeline_mode<synchronous>, transform_indices = @transform_3, window_bounds = array<i64: 1, 32>}, {pipeline_mode = #tpu.pipeline_mode<synchronous>, transform_indices = @transform_4, window_bounds = array<i64: 1, 32>}, {transform_indices = @transform_5, window_bounds = array<i64: 16, 96>}]} {
    %c0_i32 = arith.constant 0 : i32
    %0 = arith.cmpi eq, %arg1, %c0_i32 : i32
    %1 = arith.extui %0 : i1 to i32
    %c0_i32_0 = arith.constant 0 : i32
    %2 = arith.cmpi ne, %1, %c0_i32_0 : i32
    scf.if %2 {
      %c0_8 = arith.constant 0 : index
      %c0_9 = arith.constant 0 : index
      %10 = vector.load %arg2[%c0_8, %c0_9] : memref<16x32xf32, #tpu.memory_space<vmem>>, vector<16x32xf32>
      %cst_10 = arith.constant dense<0.000000e+00> : vector<16xf32>
      %11 = vector.multi_reduction <add>, %10, %cst_10 [1] : vector<16x32xf32> to vector<16xf32>
      %12 = vector.shape_cast %11 : vector<16xf32> to vector<16x1xf32>
      %cst_11 = arith.constant 3.200000e+01 : f32
      %13 = vector.broadcast %cst_11 : f32 to vector<16x1xf32>
      %14 = arith.divf %12, %13 : vector<16x1xf32>
      %15 = vector.broadcast %14 : vector<16x1xf32> to vector<16x32xf32>
      %16 = arith.subf %10, %15 : vector<16x32xf32>
      %17 = arith.mulf %16, %16 : vector<16x32xf32>
      %cst_12 = arith.constant dense<0.000000e+00> : vector<16xf32>
      %18 = vector.multi_reduction <add>, %17, %cst_12 [1] : vector<16x32xf32> to vector<16xf32>
      %19 = vector.shape_cast %18 : vector<16xf32> to vector<16x1xf32>
      %cst_13 = arith.constant 3.200000e+01 : f32
      %20 = vector.broadcast %cst_13 : f32 to vector<16x1xf32>
      %21 = arith.divf %19, %20 : vector<16x1xf32>
      %22 = vector.broadcast %14 : vector<16x1xf32> to vector<16x32xf32>
      %23 = arith.subf %10, %22 : vector<16x32xf32>
      %cst_14 = arith.constant 9.99999974E-6 : f32
      %24 = vector.broadcast %cst_14 : f32 to vector<16x1xf32>
      %25 = arith.addf %21, %24 : vector<16x1xf32>
      %26 = math.rsqrt %25 : vector<16x1xf32>
      %27 = vector.broadcast %26 : vector<16x1xf32> to vector<16x32xf32>
      %28 = arith.mulf %23, %27 : vector<16x32xf32>
      %c0_15 = arith.constant 0 : index
      %c0_16 = arith.constant 0 : index
      %29 = vector.load %arg5[%c0_15, %c0_16] : memref<1x32xf32, #tpu.memory_space<vmem>>, vector<1x32xf32>
      %30 = vector.broadcast %29 : vector<1x32xf32> to vector<16x32xf32>
      %31 = arith.mulf %30, %28 : vector<16x32xf32>
      %c0_17 = arith.constant 0 : index
      %c0_18 = arith.constant 0 : index
      %32 = vector.load %arg6[%c0_17, %c0_18] : memref<1x32xf32, #tpu.memory_space<vmem>>, vector<1x32xf32>
      %33 = vector.broadcast %32 : vector<1x32xf32> to vector<16x32xf32>
      %34 = arith.addf %31, %33 : vector<16x32xf32>
      %c0_19 = arith.constant 0 : index
      %c0_20 = arith.constant 0 : index
      %35 = vector.load %arg8[%c0_19, %c0_20] : memref<16x32xf32, #tpu.memory_space<vmem>>, vector<16x32xf32>
      tpu.vector_store %arg8[%c0_19, %c0_20], %34 {strides = array<i32>} : memref<16x32xf32, #tpu.memory_space<vmem>>, vector<16x32xf32>,
    } else {
    }
    %c0 = arith.constant 0 : index
    %c0_1 = arith.constant 0 : index
    %3 = vector.load %arg8[%c0, %c0_1] : memref<16x32xf32, #tpu.memory_space<vmem>>, vector<16x32xf32>
    %c0_2 = arith.constant 0 : index
    %c0_3 = arith.constant 0 : index
    %4 = vector.load %arg3[%c0_2, %c0_3] : memref<32x96xf32, #tpu.memory_space<vmem>>, vector<32x96xf32>
    %cst = arith.constant dense<0.000000e+00> : vector<16x96xf32>
    %5 = tpu.matmul %3, %4, %cst {dimension_numbers = #tpu.dot_dimension_numbers<[1], [0], [0], [1], [0, 0, 1, 1], [], []>} : vector<16x32xf32>, vector<32x96xf32>, vector<16x96xf32> -> vector<16x96xf32>
    %c0_4 = arith.constant 0 : index
    %c0_5 = arith.constant 0 : index
    %6 = vector.load %arg4[%c0_4, %c0_5] : memref<1x96xf32, #tpu.memory_space<vmem>>, vector<1x96xf32>
    %7 = vector.broadcast %6 : vector<1x96xf32> to vector<16x96xf32>
    %8 = arith.addf %5, %7 : vector<16x96xf32>
    %c0_6 = arith.constant 0 : index
    %c0_7 = arith.constant 0 : index
    %9 = vector.load %arg7[%c0_6, %c0_7] : memref<16x96xf32, #tpu.memory_space<vmem>>, vector<16x96xf32>
    tpu.vector_store %arg7[%c0_6, %c0_7], %8 {strides = array<i32>} : memref<16x96xf32, #tpu.memory_space<vmem>>, vector<16x96xf32>,
    return
  }
  func.func @transform_0(%arg0: i32, %arg1: i32) -> (i32, i32) {
    %c0_i32 = arith.constant 0 : i32
    %c0_i32_0 = arith.constant 0 : i32
    return %arg0, %c0_i32 : i32, i32
  }
  func.func @transform_1(%arg0: i32, %arg1: i32) -> (i32, i32) {
    %c0_i32 = arith.constant 0 : i32
    %c0_i32_0 = arith.constant 0 : i32
    return %c0_i32, %arg1 : i32, i32
  }
  func.func @transform_2(%arg0: i32, %arg1: i32) -> (i32, i32) {
    %c0_i32 = arith.constant 0 : i32
    %c0_i32_0 = arith.constant 0 : i32
    return %c0_i32, %arg1 : i32, i32
  }
  func.func @transform_3(%arg0: i32, %arg1: i32) -> (i32, i32) {
    %c0_i32 = arith.constant 0 : i32
    %c0_i32_0 = arith.constant 0 : i32
    %c0_i32_1 = arith.constant 0 : i32
    return %c0_i32, %c0_i32_0 : i32, i32
  }
  func.func @transform_4(%arg0: i32, %arg1: i32) -> (i32, i32) {
    %c0_i32 = arith.constant 0 : i32
    %c0_i32_0 = arith.constant 0 : i32
    %c0_i32_1 = arith.constant 0 : i32
    return %c0_i32, %c0_i32_0 : i32, i32
  }
  func.func @transform_5(%arg0: i32, %arg1: i32) -> (i32, i32) {
    %c0_i32 = arith.constant 0 : i32
    return %arg0, %arg1 : i32, i32
  }
}

module attributes {stable_mosaic.version = 11 : i64} {
  func.func @_linear_ln_kernel(%arg0: i32, %arg1: i32, %arg2: memref<16x32xf32, #tpu.memory_space<vmem>>, %arg3: memref<32x128xf32, #tpu.memory_space<vmem>>, %arg4: memref<1x128xf32, #tpu.memory_space<vmem>>, %arg5: memref<1x32xf32, #tpu.memory_space<vmem>>, %arg6: memref<1x32xf32, #tpu.memory_space<vmem>>, %arg7: memref<16x128xf32, #tpu.memory_space<vmem>>, %arg8: memref<16x32xf32, #tpu.memory_space<vmem>>) attributes {dimension_semantics = [#tpu.dimension_semantics<parallel>, #tpu.dimension_semantics<arbitrary>], iteration_bounds = array<i64: 1, 1>, scalar_prefetch = 0 : i64, scratch_operands = 1 : i64, tpu.core_type = #tpu.core_type<tc>, window_params = [{transform_indices = @transform_0, window_bounds = array<i64: 16, 32>}, {transform_indices = @transform_1, window_bounds = array<i64: 32, 128>}, {transform_indices = @transform_2, window_bounds = array<i64: 1, 128>}, {pipeline_mode = #tpu.pipeline_mode<synchronous>, transform_indices = @transform_3, window_bounds = array<i64: 1, 32>}, {pipeline_mode = #tpu.pipeline_mode<synchronous>, transform_indices = @transform_4, window_bounds = array<i64: 1, 32>}, {transform_indices = @transform_5, window_bounds = array<i64: 16, 128>}]} {
    %c0_i32 = arith.constant 0 : i32
    %0 = arith.cmpi eq, %arg1, %c0_i32 : i32
    %1 = arith.extui %0 : i1 to i32
    %c0_i32_0 = arith.constant 0 : i32
    %2 = arith.cmpi ne, %1, %c0_i32_0 : i32
    scf.if %2 {
      %c0_12 = arith.constant 0 : index
      %c0_13 = arith.constant 0 : index
      %23 = vector.load %arg2[%c0_12, %c0_13] : memref<16x32xf32, #tpu.memory_space<vmem>>, vector<16x32xf32>
      %cst_14 = arith.constant dense<0.000000e+00> : vector<16xf32>
      %24 = vector.multi_reduction <add>, %23, %cst_14 [1] : vector<16x32xf32> to vector<16xf32>
      %25 = vector.shape_cast %24 : vector<16xf32> to vector<16x1xf32>
      %cst_15 = arith.constant 3.200000e+01 : f32
      %26 = vector.broadcast %cst_15 : f32 to vector<16x1xf32>
      %27 = arith.divf %25, %26 : vector<16x1xf32>
      %28 = vector.broadcast %27 : vector<16x1xf32> to vector<16x32xf32>
      %29 = arith.subf %23, %28 : vector<16x32xf32>
      %30 = arith.mulf %29, %29 : vector<16x32xf32>
      %cst_16 = arith.constant dense<0.000000e+00> : vector<16xf32>
      %31 = vector.multi_reduction <add>, %30, %cst_16 [1] : vector<16x32xf32> to vector<16xf32>
      %32 = vector.shape_cast %31 : vector<16xf32> to vector<16x1xf32>
      %cst_17 = arith.constant 3.200000e+01 : f32
      %33 = vector.broadcast %cst_17 : f32 to vector<16x1xf32>
      %34 = arith.divf %32, %33 : vector<16x1xf32>
      %35 = vector.broadcast %27 : vector<16x1xf32> to vector<16x32xf32>
      %36 = arith.subf %23, %35 : vector<16x32xf32>
      %cst_18 = arith.constant 9.99999974E-6 : f32
      %37 = vector.broadcast %cst_18 : f32 to vector<16x1xf32>
      %38 = arith.addf %34, %37 : vector<16x1xf32>
      %39 = math.rsqrt %38 : vector<16x1xf32>
      %40 = vector.broadcast %39 : vector<16x1xf32> to vector<16x32xf32>
      %41 = arith.mulf %36, %40 : vector<16x32xf32>
      %c0_19 = arith.constant 0 : index
      %c0_20 = arith.constant 0 : index
      %42 = vector.load %arg5[%c0_19, %c0_20] : memref<1x32xf32, #tpu.memory_space<vmem>>, vector<1x32xf32>
      %43 = vector.broadcast %42 : vector<1x32xf32> to vector<16x32xf32>
      %44 = arith.mulf %43, %41 : vector<16x32xf32>
      %c0_21 = arith.constant 0 : index
      %c0_22 = arith.constant 0 : index
      %45 = vector.load %arg6[%c0_21, %c0_22] : memref<1x32xf32, #tpu.memory_space<vmem>>, vector<1x32xf32>
      %46 = vector.broadcast %45 : vector<1x32xf32> to vector<16x32xf32>
      %47 = arith.addf %44, %46 : vector<16x32xf32>
      %c0_23 = arith.constant 0 : index
      %c0_24 = arith.constant 0 : index
      %48 = vector.load %arg8[%c0_23, %c0_24] : memref<16x32xf32, #tpu.memory_space<vmem>>, vector<16x32xf32>
      tpu.vector_store %arg8[%c0_23, %c0_24], %47 {strides = array<i32>} : memref<16x32xf32, #tpu.memory_space<vmem>>, vector<16x32xf32>,
    } else {
    }
    %c0 = arith.constant 0 : index
    %c0_1 = arith.constant 0 : index
    %3 = vector.load %arg8[%c0, %c0_1] : memref<16x32xf32, #tpu.memory_space<vmem>>, vector<16x32xf32>
    %c0_2 = arith.constant 0 : index
    %c0_3 = arith.constant 0 : index
    %4 = vector.load %arg3[%c0_2, %c0_3] : memref<32x128xf32, #tpu.memory_space<vmem>>, vector<32x128xf32>
    %cst = arith.constant dense<0.000000e+00> : vector<16x128xf32>
    %5 = tpu.matmul %3, %4, %cst {dimension_numbers = #tpu.dot_dimension_numbers<[1], [0], [0], [1], [0, 0, 1, 1], [], []>} : vector<16x32xf32>, vector<32x128xf32>, vector<16x128xf32> -> vector<16x128xf32>
    %c0_4 = arith.constant 0 : index
    %c0_5 = arith.constant 0 : index
    %6 = vector.load %arg4[%c0_4, %c0_5] : memref<1x128xf32, #tpu.memory_space<vmem>>, vector<1x128xf32>
    %7 = vector.broadcast %6 : vector<1x128xf32> to vector<16x128xf32>
    %8 = arith.addf %5, %7 : vector<16x128xf32>
    %cst_6 = arith.constant 5.000000e-01 : f32
    %9 = vector.broadcast %cst_6 : f32 to vector<16x128xf32>
    %10 = arith.mulf %9, %8 : vector<16x128xf32>
    %11 = arith.mulf %8, %8 : vector<16x128xf32>
    %12 = arith.mulf %8, %11 : vector<16x128xf32>
    %cst_7 = arith.constant 4.471500e-02 : f32
    %13 = vector.broadcast %cst_7 : f32 to vector<16x128xf32>
    %14 = arith.mulf %13, %12 : vector<16x128xf32>
    %15 = arith.addf %8, %14 : vector<16x128xf32>
    %cst_8 = arith.constant 0.797884583 : f32
    %16 = vector.broadcast %cst_8 : f32 to vector<16x128xf32>
    %17 = arith.mulf %16, %15 : vector<16x128xf32>
    %18 = math.tanh %17 : vector<16x128xf32>
    %cst_9 = arith.constant 1.000000e+00 : f32
    %19 = vector.broadcast %cst_9 : f32 to vector<16x128xf32>
    %20 = arith.addf %19, %18 : vector<16x128xf32>
    %21 = arith.mulf %10, %20 : vector<16x128xf32>
    %c0_10 = arith.constant 0 : index
    %c0_11 = arith.constant 0 : index
    %22 = vector.load %arg7[%c0_10, %c0_11] : memref<16x128xf32, #tpu.memory_space<vmem>>, vector<16x128xf32>
    tpu.vector_store %arg7[%c0_10, %c0_11], %21 {strides = array<i32>} : memref<16x128xf32, #tpu.memory_space<vmem>>, vector<16x128xf32>,
    return
  }
  func.func @transform_0(%arg0: i32, %arg1: i32) -> (i32, i32) {
    %c0_i32 = arith.constant 0 : i32
    %c0_i32_0 = arith.constant 0 : i32
    return %arg0, %c0_i32 : i32, i32
  }
  func.func @transform_1(%arg0: i32, %arg1: i32) -> (i32, i32) {
    %c0_i32 = arith.constant 0 : i32
    %c0_i32_0 = arith.constant 0 : i32
    return %c0_i32, %arg1 : i32, i32
  }
  func.func @transform_2(%arg0: i32, %arg1: i32) -> (i32, i32) {
    %c0_i32 = arith.constant 0 : i32
    %c0_i32_0 = arith.constant 0 : i32
    return %c0_i32, %arg1 : i32, i32
  }
  func.func @transform_3(%arg0: i32, %arg1: i32) -> (i32, i32) {
    %c0_i32 = arith.constant 0 : i32
    %c0_i32_0 = arith.constant 0 : i32
    %c0_i32_1 = arith.constant 0 : i32
    return %c0_i32, %c0_i32_0 : i32, i32
  }
  func.func @transform_4(%arg0: i32, %arg1: i32) -> (i32, i32) {
    %c0_i32 = arith.constant 0 : i32
    %c0_i32_0 = arith.constant 0 : i32
    %c0_i32_1 = arith.constant 0 : i32
    return %c0_i32, %c0_i32_0 : i32, i32
  }
  func.func @transform_5(%arg0: i32, %arg1: i32) -> (i32, i32) {
    %c0_i32 = arith.constant 0 : i32
    return %arg0, %arg1 : i32, i32
  }
}

module attributes {stable_mosaic.version = 11 : i64} {
  func.func @_flash_attn_kernel(%arg0: i32, %arg1: i32, %arg2: i32, %arg3: memref<1x8x96xf32, #tpu.memory_space<vmem>>, %arg4: memref<1x8x96xf32, #tpu.memory_space<vmem>>, %arg5: memref<1x8x32xf32, #tpu.memory_space<vmem>>, %arg6: memref<4x8x1xf32, #tpu.memory_space<vmem>>, %arg7: memref<4x8x1xf32, #tpu.memory_space<vmem>>, %arg8: memref<4x8x8xf32, #tpu.memory_space<vmem>>) attributes {dimension_semantics = [#tpu.dimension_semantics<parallel>, #tpu.dimension_semantics<parallel>, #tpu.dimension_semantics<arbitrary>], iteration_bounds = array<i64: 2, 1, 1>, scalar_prefetch = 0 : i64, scratch_operands = 3 : i64, tpu.core_type = #tpu.core_type<tc>, window_params = [{transform_indices = @transform_0, window_bounds = array<i64: 1, 8, 96>}, {transform_indices = @transform_1, window_bounds = array<i64: 1, 8, 96>}, {transform_indices = @transform_2, window_bounds = array<i64: 1, 8, 32>}]} {
    %c0_i32 = arith.constant 0 : i32
    %0 = arith.cmpi eq, %arg2, %c0_i32 : i32
    %1 = arith.extui %0 : i1 to i32
    %c0_i32_0 = arith.constant 0 : i32
    %2 = arith.cmpi ne, %1, %c0_i32_0 : i32
    scf.if %2 {
      %cst = arith.constant 0xFF800000 : f32
      %12 = vector.broadcast %cst : f32 to vector<4x8x1xf32>
      %c0 = arith.constant 0 : index
      %c0_5 = arith.constant 0 : index
      %c0_6 = arith.constant 0 : index
      %13 = vector.load %arg6[%c0, %c0_5, %c0_6] : memref<4x8x1xf32, #tpu.memory_space<vmem>>, vector<4x8x1xf32>
      tpu.vector_store %arg6[%c0, %c0_5, %c0_6], %12 {strides = array<i32>} : memref<4x8x1xf32, #tpu.memory_space<vmem>>, vector<4x8x1xf32>,
      %cst_7 = arith.constant 0.000000e+00 : f32
      %14 = vector.broadcast %cst_7 : f32 to vector<4x8x1xf32>
      %c0_8 = arith.constant 0 : index
      %c0_9 = arith.constant 0 : index
      %c0_10 = arith.constant 0 : index
      %15 = vector.load %arg7[%c0_8, %c0_9, %c0_10] : memref<4x8x1xf32, #tpu.memory_space<vmem>>, vector<4x8x1xf32>
      tpu.vector_store %arg7[%c0_8, %c0_9, %c0_10], %14 {strides = array<i32>} : memref<4x8x1xf32, #tpu.memory_space<vmem>>, vector<4x8x1xf32>,
      %cst_11 = arith.constant 0.000000e+00 : f32
      %16 = vector.broadcast %cst_11 : f32 to vector<4x8x8xf32>
      %c0_12 = arith.constant 0 : index
      %c0_13 = arith.constant 0 : index
      %c0_14 = arith.constant 0 : index
      %17 = vector.load %arg8[%c0_12, %c0_13, %c0_14] : memref<4x8x8xf32, #tpu.memory_space<vmem>>, vector<4x8x8xf32>
      tpu.vector_store %arg8[%c0_12, %c0_13, %c0_14], %16 {strides = array<i32>} : memref<4x8x8xf32, #tpu.memory_space<vmem>>, vector<4x8x8xf32>,
    } else {
    }
    %c8_i32 = arith.constant 8 : i32
    %3 = arith.muli %arg2, %c8_i32 : i32
    %c8_i32_1 = arith.constant 8 : i32
    %4 = arith.muli %arg1, %c8_i32_1 : i32
    %c7_i32 = arith.constant 7 : i32
    %5 = arith.addi %4, %c7_i32 : i32
    %6 = arith.cmpi sle, %3, %5 : i32
    %7 = arith.extui %6 : i1 to i32
    %c0_i32_2 = arith.constant 0 : i32
    %8 = arith.cmpi ne, %7, %c0_i32_2 : i32
    scf.if %8 {
      %c8_i32_5 = arith.constant 8 : i32
      %12 = arith.muli %arg1, %c8_i32_5 : i32
      %13 = tpu.iota {dimensions = array<i32: 0>} : vector<8x8xi32>
      %14 = vector.broadcast %12 : i32 to vector<8x8xi32>
      %15 = arith.addi %14, %13 : vector<8x8xi32>
      %c8_i32_6 = arith.constant 8 : i32
      %16 = arith.muli %arg2, %c8_i32_6 : i32
      %17 = tpu.iota {dimensions = array<i32: 1>} : vector<8x8xi32>
      %18 = vector.broadcast %16 : i32 to vector<8x8xi32>
      %19 = arith.addi %18, %17 : vector<8x8xi32>
      %20 = arith.cmpi sle, %19, %15 : vector<8x8xi32>
      %c0 = arith.constant 0 : index
      %c0_7 = arith.constant 0 : index
      %c0_8 = arith.constant 0 : index
      %21 = vector.load %arg3[%c0, %c0_7, %c0_8] : memref<1x8x96xf32, #tpu.memory_space<vmem>>, vector<1x8x8xf32>
      %22 = vector.shape_cast %21 : vector<1x8x8xf32> to vector<8x8xf32>
      %cst = arith.constant 0.353553385 : f32
      %23 = vector.broadcast %cst : f32 to vector<8x8xf32>
      %24 = arith.mulf %22, %23 : vector<8x8xf32>
      %c0_9 = arith.constant 0 : index
      %c0_10 = arith.constant 0 : index
      %c32 = arith.constant 32 : index
      %25 = vector.load %arg4[%c0_9, %c0_10, %c32] : memref<1x8x96xf32, #tpu.memory_space<vmem>>, vector<1x8x8xf32>
      %26 = vector.shape_cast %25 : vector<1x8x8xf32> to vector<8x8xf32>
      %c0_11 = arith.constant 0 : index
      %c0_12 = arith.constant 0 : index
      %c64 = arith.constant 64 : index
      %27 = vector.load %arg4[%c0_11, %c0_12, %c64] : memref<1x8x96xf32, #tpu.memory_space<vmem>>, vector<1x8x8xf32>
      %28 = vector.shape_cast %27 : vector<1x8x8xf32> to vector<8x8xf32>
      %cst_13 = arith.constant dense<0.000000e+00> : vector<8x8xf32>
      %29 = tpu.matmul %24, %26, %cst_13 {dimension_numbers = #tpu.dot_dimension_numbers<[1], [1], [0], [0], [0, 0, 1, 0], [], []>} : vector<8x8xf32>, vector<8x8xf32>, vector<8x8xf32> -> vector<8x8xf32>
      %cst_14 = arith.constant -1.000000e+10 : f32
      %30 = vector.broadcast %cst_14 : f32 to vector<8x8xf32>
      %31 = arith.select %20, %29, %30 : vector<8x8xi1>, vector<8x8xf32>
      %c0_15 = arith.constant 0 : index
      %c0_16 = arith.constant 0 : index
      %c0_17 = arith.constant 0 : index
      %32 = vector.load %arg6[%c0_15, %c0_16, %c0_17] : memref<4x8x1xf32, #tpu.memory_space<vmem>>, vector<1x8x1xf32>
      %33 = vector.shape_cast %32 : vector<1x8x1xf32> to vector<8x1xf32>
      %cst_18 = arith.constant dense<0xFF800000> : vector<8xf32>
      %34 = vector.multi_reduction <maximumf>, %31, %cst_18 [1] : vector<8x8xf32> to vector<8xf32>
      %35 = vector.shape_cast %34 : vector<8xf32> to vector<8x1xf32>
      %36 = arith.maximumf %33, %35 : vector<8x1xf32>
      %37 = arith.subf %33, %36 : vector<8x1xf32>
      %38 = math.exp %37 : vector<8x1xf32>
      %39 = vector.broadcast %36 : vector<8x1xf32> to vector<8x8xf32>
      %40 = arith.subf %31, %39 : vector<8x8xf32>
      %41 = math.exp %40 : vector<8x8xf32>
      %c0_19 = arith.constant 0 : index
      %c0_20 = arith.constant 0 : index
      %c0_21 = arith.constant 0 : index
      %42 = vector.load %arg7[%c0_19, %c0_20, %c0_21] : memref<4x8x1xf32, #tpu.memory_space<vmem>>, vector<1x8x1xf32>
      %43 = vector.shape_cast %42 : vector<1x8x1xf32> to vector<8x1xf32>
      %44 = arith.mulf %38, %43 : vector<8x1xf32>
      %cst_22 = arith.constant dense<0.000000e+00> : vector<8xf32>
      %45 = vector.multi_reduction <add>, %41, %cst_22 [1] : vector<8x8xf32> to vector<8xf32>
      %46 = vector.shape_cast %45 : vector<8xf32> to vector<8x1xf32>
      %47 = arith.addf %44, %46 : vector<8x1xf32>
      %c0_23 = arith.constant 0 : index
      %c0_24 = arith.constant 0 : index
      %c0_25 = arith.constant 0 : index
      %48 = vector.load %arg7[%c0_23, %c0_24, %c0_25] : memref<4x8x1xf32, #tpu.memory_space<vmem>>, vector<1x8x1xf32>
      %49 = vector.shape_cast %48 : vector<1x8x1xf32> to vector<8x1xf32>
      %50 = vector.shape_cast %47 : vector<8x1xf32> to vector<1x8x1xf32>
      tpu.vector_store %arg7[%c0_23, %c0_24, %c0_25], %50 {strides = array<i32>} : memref<4x8x1xf32, #tpu.memory_space<vmem>>, vector<1x8x1xf32>,
      %cst_26 = arith.constant dense<0.000000e+00> : vector<8x8xf32>
      %51 = tpu.matmul %41, %28, %cst_26 {dimension_numbers = #tpu.dot_dimension_numbers<[1], [0], [0], [1], [0, 0, 1, 1], [], []>} : vector<8x8xf32>, vector<8x8xf32>, vector<8x8xf32> -> vector<8x8xf32>
      %c0_27 = arith.constant 0 : index
      %c0_28 = arith.constant 0 : index
      %c0_29 = arith.constant 0 : index
      %52 = vector.load %arg8[%c0_27, %c0_28, %c0_29] : memref<4x8x8xf32, #tpu.memory_space<vmem>>, vector<1x8x8xf32>
      %53 = vector.shape_cast %52 : vector<1x8x8xf32> to vector<8x8xf32>
      %54 = vector.broadcast %38 : vector<8x1xf32> to vector<8x8xf32>
      %55 = arith.mulf %54, %53 : vector<8x8xf32>
      %56 = arith.addf %55, %51 : vector<8x8xf32>
      %c0_30 = arith.constant 0 : index
      %c0_31 = arith.constant 0 : index
      %c0_32 = arith.constant 0 : index
      %57 = vector.load %arg8[%c0_30, %c0_31, %c0_32] : memref<4x8x8xf32, #tpu.memory_space<vmem>>, vector<1x8x8xf32>
      %58 = vector.shape_cast %57 : vector<1x8x8xf32> to vector<8x8xf32>
      %59 = vector.shape_cast %56 : vector<8x8xf32> to vector<1x8x8xf32>
      tpu.vector_store %arg8[%c0_30, %c0_31, %c0_32], %59 {strides = array<i32>} : memref<4x8x8xf32, #tpu.memory_space<vmem>>, vector<1x8x8xf32>,
      %c0_33 = arith.constant 0 : index
      %c0_34 = arith.constant 0 : index
      %c0_35 = arith.constant 0 : index
      %60 = vector.load %arg6[%c0_33, %c0_34, %c0_35] : memref<4x8x1xf32, #tpu.memory_space<vmem>>, vector<1x8x1xf32>
      %61 = vector.shape_cast %60 : vector<1x8x1xf32> to vector<8x1xf32>
      %62 = vector.shape_cast %36 : vector<8x1xf32> to vector<1x8x1xf32>
      tpu.vector_store %arg6[%c0_33, %c0_34, %c0_35], %62 {strides = array<i32>} : memref<4x8x1xf32, #tpu.memory_space<vmem>>, vector<1x8x1xf32>,
      %c0_36 = arith.constant 0 : index
      %c0_37 = arith.constant 0 : index
      %c8 = arith.constant 8 : index
      %63 = vector.load %arg3[%c0_36, %c0_37, %c8] : memref<1x8x96xf32, #tpu.memory_space<vmem>>, vector<1x8x8xf32>
      %64 = vector.shape_cast %63 : vector<1x8x8xf32> to vector<8x8xf32>
      %cst_38 = arith.constant 0.353553385 : f32
      %65 = vector.broadcast %cst_38 : f32 to vector<8x8xf32>
      %66 = arith.mulf %64, %65 : vector<8x8xf32>
      %c0_39 = arith.constant 0 : index
      %c0_40 = arith.constant 0 : index
      %c40 = arith.constant 40 : index
      %67 = vector.load %arg4[%c0_39, %c0_40, %c40] : memref<1x8x96xf32, #tpu.memory_space<vmem>>, vector<1x8x8xf32>
      %68 = vector.shape_cast %67 : vector<1x8x8xf32> to vector<8x8xf32>
      %c0_41 = arith.constant 0 : index
      %c0_42 = arith.constant 0 : index
      %c72 = arith.constant 72 : index
      %69 = vector.load %arg4[%c0_41, %c0_42, %c72] : memref<1x8x96xf32, #tpu.memory_space<vmem>>, vector<1x8x8xf32>
      %70 = vector.shape_cast %69 : vector<1x8x8xf32> to vector<8x8xf32>
      %cst_43 = arith.constant dense<0.000000e+00> : vector<8x8xf32>
      %71 = tpu.matmul %66, %68, %cst_43 {dimension_numbers = #tpu.dot_dimension_numbers<[1], [1], [0], [0], [0, 0, 1, 0], [], []>} : vector<8x8xf32>, vector<8x8xf32>, vector<8x8xf32> -> vector<8x8xf32>
      %cst_44 = arith.constant -1.000000e+10 : f32
      %72 = vector.broadcast %cst_44 : f32 to vector<8x8xf32>
      %73 = arith.select %20, %71, %72 : vector<8x8xi1>, vector<8x8xf32>
      %c1 = arith.constant 1 : index
      %c0_45 = arith.constant 0 : index
      %c0_46 = arith.constant 0 : index
      %74 = vector.load %arg6[%c1, %c0_45, %c0_46] : memref<4x8x1xf32, #tpu.memory_space<vmem>>, vector<1x8x1xf32>
      %75 = vector.shape_cast %74 : vector<1x8x1xf32> to vector<8x1xf32>
      %cst_47 = arith.constant dense<0xFF800000> : vector<8xf32>
      %76 = vector.multi_reduction <maximumf>, %73, %cst_47 [1] : vector<8x8xf32> to vector<8xf32>
      %77 = vector.shape_cast %76 : vector<8xf32> to vector<8x1xf32>
      %78 = arith.maximumf %75, %77 : vector<8x1xf32>
      %79 = arith.subf %75, %78 : vector<8x1xf32>
      %80 = math.exp %79 : vector<8x1xf32>
      %81 = vector.broadcast %78 : vector<8x1xf32> to vector<8x8xf32>
      %82 = arith.subf %73, %81 : vector<8x8xf32>
      %83 = math.exp %82 : vector<8x8xf32>
      %c1_48 = arith.constant 1 : index
      %c0_49 = arith.constant 0 : index
      %c0_50 = arith.constant 0 : index
      %84 = vector.load %arg7[%c1_48, %c0_49, %c0_50] : memref<4x8x1xf32, #tpu.memory_space<vmem>>, vector<1x8x1xf32>
      %85 = vector.shape_cast %84 : vector<1x8x1xf32> to vector<8x1xf32>
      %86 = arith.mulf %80, %85 : vector<8x1xf32>
      %cst_51 = arith.constant dense<0.000000e+00> : vector<8xf32>
      %87 = vector.multi_reduction <add>, %83, %cst_51 [1] : vector<8x8xf32> to vector<8xf32>
      %88 = vector.shape_cast %87 : vector<8xf32> to vector<8x1xf32>
      %89 = arith.addf %86, %88 : vector<8x1xf32>
      %c1_52 = arith.constant 1 : index
      %c0_53 = arith.constant 0 : index
      %c0_54 = arith.constant 0 : index
      %90 = vector.load %arg7[%c1_52, %c0_53, %c0_54] : memref<4x8x1xf32, #tpu.memory_space<vmem>>, vector<1x8x1xf32>
      %91 = vector.shape_cast %90 : vector<1x8x1xf32> to vector<8x1xf32>
      %92 = vector.shape_cast %89 : vector<8x1xf32> to vector<1x8x1xf32>
      tpu.vector_store %arg7[%c1_52, %c0_53, %c0_54], %92 {strides = array<i32>} : memref<4x8x1xf32, #tpu.memory_space<vmem>>, vector<1x8x1xf32>,
      %cst_55 = arith.constant dense<0.000000e+00> : vector<8x8xf32>
      %93 = tpu.matmul %83, %70, %cst_55 {dimension_numbers = #tpu.dot_dimension_numbers<[1], [0], [0], [1], [0, 0, 1, 1], [], []>} : vector<8x8xf32>, vector<8x8xf32>, vector<8x8xf32> -> vector<8x8xf32>
      %c1_56 = arith.constant 1 : index
      %c0_57 = arith.constant 0 : index
      %c0_58 = arith.constant 0 : index
      %94 = vector.load %arg8[%c1_56, %c0_57, %c0_58] : memref<4x8x8xf32, #tpu.memory_space<vmem>>, vector<1x8x8xf32>
      %95 = vector.shape_cast %94 : vector<1x8x8xf32> to vector<8x8xf32>
      %96 = vector.broadcast %80 : vector<8x1xf32> to vector<8x8xf32>
      %97 = arith.mulf %96, %95 : vector<8x8xf32>
      %98 = arith.addf %97, %93 : vector<8x8xf32>
      %c1_59 = arith.constant 1 : index
      %c0_60 = arith.constant 0 : index
      %c0_61 = arith.constant 0 : index
      %99 = vector.load %arg8[%c1_59, %c0_60, %c0_61] : memref<4x8x8xf32, #tpu.memory_space<vmem>>, vector<1x8x8xf32>
      %100 = vector.shape_cast %99 : vector<1x8x8xf32> to vector<8x8xf32>
      %101 = vector.shape_cast %98 : vector<8x8xf32> to vector<1x8x8xf32>
      tpu.vector_store %arg8[%c1_59, %c0_60, %c0_61], %101 {strides = array<i32>} : memref<4x8x8xf32, #tpu.memory_space<vmem>>, vector<1x8x8xf32>,
      %c1_62 = arith.constant 1 : index
      %c0_63 = arith.constant 0 : index
      %c0_64 = arith.constant 0 : index
      %102 = vector.load %arg6[%c1_62, %c0_63, %c0_64] : memref<4x8x1xf32, #tpu.memory_space<vmem>>, vector<1x8x1xf32>
      %103 = vector.shape_cast %102 : vector<1x8x1xf32> to vector<8x1xf32>
      %104 = vector.shape_cast %78 : vector<8x1xf32> to vector<1x8x1xf32>
      tpu.vector_store %arg6[%c1_62, %c0_63, %c0_64], %104 {strides = array<i32>} : memref<4x8x1xf32, #tpu.memory_space<vmem>>, vector<1x8x1xf32>,
      %c0_65 = arith.constant 0 : index
      %c0_66 = arith.constant 0 : index
      %c16 = arith.constant 16 : index
      %105 = vector.load %arg3[%c0_65, %c0_66, %c16] : memref<1x8x96xf32, #tpu.memory_space<vmem>>, vector<1x8x8xf32>
      %106 = vector.shape_cast %105 : vector<1x8x8xf32> to vector<8x8xf32>
      %cst_67 = arith.constant 0.353553385 : f32
      %107 = vector.broadcast %cst_67 : f32 to vector<8x8xf32>
      %108 = arith.mulf %106, %107 : vector<8x8xf32>
      %c0_68 = arith.constant 0 : index
      %c0_69 = arith.constant 0 : index
      %c48 = arith.constant 48 : index
      %109 = vector.load %arg4[%c0_68, %c0_69, %c48] : memref<1x8x96xf32, #tpu.memory_space<vmem>>, vector<1x8x8xf32>
      %110 = vector.shape_cast %109 : vector<1x8x8xf32> to vector<8x8xf32>
      %c0_70 = arith.constant 0 : index
      %c0_71 = arith.constant 0 : index
      %c80 = arith.constant 80 : index
      %111 = vector.load %arg4[%c0_70, %c0_71, %c80] : memref<1x8x96xf32, #tpu.memory_space<vmem>>, vector<1x8x8xf32>
      %112 = vector.shape_cast %111 : vector<1x8x8xf32> to vector<8x8xf32>
      %cst_72 = arith.constant dense<0.000000e+00> : vector<8x8xf32>
      %113 = tpu.matmul %108, %110, %cst_72 {dimension_numbers = #tpu.dot_dimension_numbers<[1], [1], [0], [0], [0, 0, 1, 0], [], []>} : vector<8x8xf32>, vector<8x8xf32>, vector<8x8xf32> -> vector<8x8xf32>
      %cst_73 = arith.constant -1.000000e+10 : f32
      %114 = vector.broadcast %cst_73 : f32 to vector<8x8xf32>
      %115 = arith.select %20, %113, %114 : vector<8x8xi1>, vector<8x8xf32>
      %c2 = arith.constant 2 : index
      %c0_74 = arith.constant 0 : index
      %c0_75 = arith.constant 0 : index
      %116 = vector.load %arg6[%c2, %c0_74, %c0_75] : memref<4x8x1xf32, #tpu.memory_space<vmem>>, vector<1x8x1xf32>
      %117 = vector.shape_cast %116 : vector<1x8x1xf32> to vector<8x1xf32>
      %cst_76 = arith.constant dense<0xFF800000> : vector<8xf32>
      %118 = vector.multi_reduction <maximumf>, %115, %cst_76 [1] : vector<8x8xf32> to vector<8xf32>
      %119 = vector.shape_cast %118 : vector<8xf32> to vector<8x1xf32>
      %120 = arith.maximumf %117, %119 : vector<8x1xf32>
      %121 = arith.subf %117, %120 : vector<8x1xf32>
      %122 = math.exp %121 : vector<8x1xf32>
      %123 = vector.broadcast %120 : vector<8x1xf32> to vector<8x8xf32>
      %124 = arith.subf %115, %123 : vector<8x8xf32>
      %125 = math.exp %124 : vector<8x8xf32>
      %c2_77 = arith.constant 2 : index
      %c0_78 = arith.constant 0 : index
      %c0_79 = arith.constant 0 : index
      %126 = vector.load %arg7[%c2_77, %c0_78, %c0_79] : memref<4x8x1xf32, #tpu.memory_space<vmem>>, vector<1x8x1xf32>
      %127 = vector.shape_cast %126 : vector<1x8x1xf32> to vector<8x1xf32>
      %128 = arith.mulf %122, %127 : vector<8x1xf32>
      %cst_80 = arith.constant dense<0.000000e+00> : vector<8xf32>
      %129 = vector.multi_reduction <add>, %125, %cst_80 [1] : vector<8x8xf32> to vector<8xf32>
      %130 = vector.shape_cast %129 : vector<8xf32> to vector<8x1xf32>
      %131 = arith.addf %128, %130 : vector<8x1xf32>
      %c2_81 = arith.constant 2 : index
      %c0_82 = arith.constant 0 : index
      %c0_83 = arith.constant 0 : index
      %132 = vector.load %arg7[%c2_81, %c0_82, %c0_83] : memref<4x8x1xf32, #tpu.memory_space<vmem>>, vector<1x8x1xf32>
      %133 = vector.shape_cast %132 : vector<1x8x1xf32> to vector<8x1xf32>
      %134 = vector.shape_cast %131 : vector<8x1xf32> to vector<1x8x1xf32>
      tpu.vector_store %arg7[%c2_81, %c0_82, %c0_83], %134 {strides = array<i32>} : memref<4x8x1xf32, #tpu.memory_space<vmem>>, vector<1x8x1xf32>,
      %cst_84 = arith.constant dense<0.000000e+00> : vector<8x8xf32>
      %135 = tpu.matmul %125, %112, %cst_84 {dimension_numbers = #tpu.dot_dimension_numbers<[1], [0], [0], [1], [0, 0, 1, 1], [], []>} : vector<8x8xf32>, vector<8x8xf32>, vector<8x8xf32> -> vector<8x8xf32>
      %c2_85 = arith.constant 2 : index
      %c0_86 = arith.constant 0 : index
      %c0_87 = arith.constant 0 : index
      %136 = vector.load %arg8[%c2_85, %c0_86, %c0_87] : memref<4x8x8xf32, #tpu.memory_space<vmem>>, vector<1x8x8xf32>
      %137 = vector.shape_cast %136 : vector<1x8x8xf32> to vector<8x8xf32>
      %138 = vector.broadcast %122 : vector<8x1xf32> to vector<8x8xf32>
      %139 = arith.mulf %138, %137 : vector<8x8xf32>
      %140 = arith.addf %139, %135 : vector<8x8xf32>
      %c2_88 = arith.constant 2 : index
      %c0_89 = arith.constant 0 : index
      %c0_90 = arith.constant 0 : index
      %141 = vector.load %arg8[%c2_88, %c0_89, %c0_90] : memref<4x8x8xf32, #tpu.memory_space<vmem>>, vector<1x8x8xf32>
      %142 = vector.shape_cast %141 : vector<1x8x8xf32> to vector<8x8xf32>
      %143 = vector.shape_cast %140 : vector<8x8xf32> to vector<1x8x8xf32>
      tpu.vector_store %arg8[%c2_88, %c0_89, %c0_90], %143 {strides = array<i32>} : memref<4x8x8xf32, #tpu.memory_space<vmem>>, vector<1x8x8xf32>,
      %c2_91 = arith.constant 2 : index
      %c0_92 = arith.constant 0 : index
      %c0_93 = arith.constant 0 : index
      %144 = vector.load %arg6[%c2_91, %c0_92, %c0_93] : memref<4x8x1xf32, #tpu.memory_space<vmem>>, vector<1x8x1xf32>
      %145 = vector.shape_cast %144 : vector<1x8x1xf32> to vector<8x1xf32>
      %146 = vector.shape_cast %120 : vector<8x1xf32> to vector<1x8x1xf32>
      tpu.vector_store %arg6[%c2_91, %c0_92, %c0_93], %146 {strides = array<i32>} : memref<4x8x1xf32, #tpu.memory_space<vmem>>, vector<1x8x1xf32>,
      %c0_94 = arith.constant 0 : index
      %c0_95 = arith.constant 0 : index
      %c24 = arith.constant 24 : index
      %147 = vector.load %arg3[%c0_94, %c0_95, %c24] : memref<1x8x96xf32, #tpu.memory_space<vmem>>, vector<1x8x8xf32>
      %148 = vector.shape_cast %147 : vector<1x8x8xf32> to vector<8x8xf32>
      %cst_96 = arith.constant 0.353553385 : f32
      %149 = vector.broadcast %cst_96 : f32 to vector<8x8xf32>
      %150 = arith.mulf %148, %149 : vector<8x8xf32>
      %c0_97 = arith.constant 0 : index
      %c0_98 = arith.constant 0 : index
      %c56 = arith.constant 56 : index
      %151 = vector.load %arg4[%c0_97, %c0_98, %c56] : memref<1x8x96xf32, #tpu.memory_space<vmem>>, vector<1x8x8xf32>
      %152 = vector.shape_cast %151 : vector<1x8x8xf32> to vector<8x8xf32>
      %c0_99 = arith.constant 0 : index
      %c0_100 = arith.constant 0 : index
      %c88 = arith.constant 88 : index
      %153 = vector.load %arg4[%c0_99, %c0_100, %c88] : memref<1x8x96xf32, #tpu.memory_space<vmem>>, vector<1x8x8xf32>
      %154 = vector.shape_cast %153 : vector<1x8x8xf32> to vector<8x8xf32>
      %cst_101 = arith.constant dense<0.000000e+00> : vector<8x8xf32>
      %155 = tpu.matmul %150, %152, %cst_101 {dimension_numbers = #tpu.dot_dimension_numbers<[1], [1], [0], [0], [0, 0, 1, 0], [], []>} : vector<8x8xf32>, vector<8x8xf32>, vector<8x8xf32> -> vector<8x8xf32>
      %cst_102 = arith.constant -1.000000e+10 : f32
      %156 = vector.broadcast %cst_102 : f32 to vector<8x8xf32>
      %157 = arith.select %20, %155, %156 : vector<8x8xi1>, vector<8x8xf32>
      %c3 = arith.constant 3 : index
      %c0_103 = arith.constant 0 : index
      %c0_104 = arith.constant 0 : index
      %158 = vector.load %arg6[%c3, %c0_103, %c0_104] : memref<4x8x1xf32, #tpu.memory_space<vmem>>, vector<1x8x1xf32>
      %159 = vector.shape_cast %158 : vector<1x8x1xf32> to vector<8x1xf32>
      %cst_105 = arith.constant dense<0xFF800000> : vector<8xf32>
      %160 = vector.multi_reduction <maximumf>, %157, %cst_105 [1] : vector<8x8xf32> to vector<8xf32>
      %161 = vector.shape_cast %160 : vector<8xf32> to vector<8x1xf32>
      %162 = arith.maximumf %159, %161 : vector<8x1xf32>
      %163 = arith.subf %159, %162 : vector<8x1xf32>
      %164 = math.exp %163 : vector<8x1xf32>
      %165 = vector.broadcast %162 : vector<8x1xf32> to vector<8x8xf32>
      %166 = arith.subf %157, %165 : vector<8x8xf32>
      %167 = math.exp %166 : vector<8x8xf32>
      %c3_106 = arith.constant 3 : index
      %c0_107 = arith.constant 0 : index
      %c0_108 = arith.constant 0 : index
      %168 = vector.load %arg7[%c3_106, %c0_107, %c0_108] : memref<4x8x1xf32, #tpu.memory_space<vmem>>, vector<1x8x1xf32>
      %169 = vector.shape_cast %168 : vector<1x8x1xf32> to vector<8x1xf32>
      %170 = arith.mulf %164, %169 : vector<8x1xf32>
      %cst_109 = arith.constant dense<0.000000e+00> : vector<8xf32>
      %171 = vector.multi_reduction <add>, %167, %cst_109 [1] : vector<8x8xf32> to vector<8xf32>
      %172 = vector.shape_cast %171 : vector<8xf32> to vector<8x1xf32>
      %173 = arith.addf %170, %172 : vector<8x1xf32>
      %c3_110 = arith.constant 3 : index
      %c0_111 = arith.constant 0 : index
      %c0_112 = arith.constant 0 : index
      %174 = vector.load %arg7[%c3_110, %c0_111, %c0_112] : memref<4x8x1xf32, #tpu.memory_space<vmem>>, vector<1x8x1xf32>
      %175 = vector.shape_cast %174 : vector<1x8x1xf32> to vector<8x1xf32>
      %176 = vector.shape_cast %173 : vector<8x1xf32> to vector<1x8x1xf32>
      tpu.vector_store %arg7[%c3_110, %c0_111, %c0_112], %176 {strides = array<i32>} : memref<4x8x1xf32, #tpu.memory_space<vmem>>, vector<1x8x1xf32>,
      %cst_113 = arith.constant dense<0.000000e+00> : vector<8x8xf32>
      %177 = tpu.matmul %167, %154, %cst_113 {dimension_numbers = #tpu.dot_dimension_numbers<[1], [0], [0], [1], [0, 0, 1, 1], [], []>} : vector<8x8xf32>, vector<8x8xf32>, vector<8x8xf32> -> vector<8x8xf32>
      %c3_114 = arith.constant 3 : index
      %c0_115 = arith.constant 0 : index
      %c0_116 = arith.constant 0 : index
      %178 = vector.load %arg8[%c3_114, %c0_115, %c0_116] : memref<4x8x8xf32, #tpu.memory_space<vmem>>, vector<1x8x8xf32>
      %179 = vector.shape_cast %178 : vector<1x8x8xf32> to vector<8x8xf32>
      %180 = vector.broadcast %164 : vector<8x1xf32> to vector<8x8xf32>
      %181 = arith.mulf %180, %179 : vector<8x8xf32>
      %182 = arith.addf %181, %177 : vector<8x8xf32>
      %c3_117 = arith.constant 3 : index
      %c0_118 = arith.constant 0 : index
      %c0_119 = arith.constant 0 : index
      %183 = vector.load %arg8[%c3_117, %c0_118, %c0_119] : memref<4x8x8xf32, #tpu.memory_space<vmem>>, vector<1x8x8xf32>
      %184 = vector.shape_cast %183 : vector<1x8x8xf32> to vector<8x8xf32>
      %185 = vector.shape_cast %182 : vector<8x8xf32> to vector<1x8x8xf32>
      tpu.vector_store %arg8[%c3_117, %c0_118, %c0_119], %185 {strides = array<i32>} : memref<4x8x8xf32, #tpu.memory_space<vmem>>, vector<1x8x8xf32>,
      %c3_120 = arith.constant 3 : index
      %c0_121 = arith.constant 0 : index
      %c0_122 = arith.constant 0 : index
      %186 = vector.load %arg6[%c3_120, %c0_121, %c0_122] : memref<4x8x1xf32, #tpu.memory_space<vmem>>, vector<1x8x1xf32>
      %187 = vector.shape_cast %186 : vector<1x8x1xf32> to vector<8x1xf32>
      %188 = vector.shape_cast %162 : vector<8x1xf32> to vector<1x8x1xf32>
      tpu.vector_store %arg6[%c3_120, %c0_121, %c0_122], %188 {strides = array<i32>} : memref<4x8x1xf32, #tpu.memory_space<vmem>>, vector<1x8x1xf32>,
    } else {
    }
    %c0_i32_3 = arith.constant 0 : i32
    %9 = arith.cmpi eq, %arg2, %c0_i32_3 : i32
    %10 = arith.extui %9 : i1 to i32
    %c0_i32_4 = arith.constant 0 : i32
    %11 = arith.cmpi ne, %10, %c0_i32_4 : i32
    scf.if %11 {
      %c0 = arith.constant 0 : index
      %c0_5 = arith.constant 0 : index
      %c0_6 = arith.constant 0 : index
      %12 = vector.load %arg7[%c0, %c0_5, %c0_6] : memref<4x8x1xf32, #tpu.memory_space<vmem>>, vector<1x8x1xf32>
      %13 = vector.shape_cast %12 : vector<1x8x1xf32> to vector<8x1xf32>
      %14 = tpu.reciprocal %13 {approx = true} : vector<8x1xf32> -> vector<8x1xf32>
      %c0_7 = arith.constant 0 : index
      %c0_8 = arith.constant 0 : index
      %c0_9 = arith.constant 0 : index
      %15 = vector.load %arg8[%c0_7, %c0_8, %c0_9] : memref<4x8x8xf32, #tpu.memory_space<vmem>>, vector<1x8x8xf32>
      %16 = vector.shape_cast %15 : vector<1x8x8xf32> to vector<8x8xf32>
      %17 = vector.broadcast %14 : vector<8x1xf32> to vector<8x8xf32>
      %18 = arith.mulf %16, %17 : vector<8x8xf32>
      %c0_10 = arith.constant 0 : index
      %c0_11 = arith.constant 0 : index
      %c0_12 = arith.constant 0 : index
      %19 = vector.load %arg5[%c0_10, %c0_11, %c0_12] : memref<1x8x32xf32, #tpu.memory_space<vmem>>, vector<1x8x8xf32>
      %20 = vector.shape_cast %19 : vector<1x8x8xf32> to vector<8x8xf32>
      %21 = vector.shape_cast %18 : vector<8x8xf32> to vector<1x8x8xf32>
      tpu.vector_store %arg5[%c0_10, %c0_11, %c0_12], %21 {strides = array<i32>} : memref<1x8x32xf32, #tpu.memory_space<vmem>>, vector<1x8x8xf32>,
      %c1 = arith.constant 1 : index
      %c0_13 = arith.constant 0 : index
      %c0_14 = arith.constant 0 : index
      %22 = vector.load %arg7[%c1, %c0_13, %c0_14] : memref<4x8x1xf32, #tpu.memory_space<vmem>>, vector<1x8x1xf32>
      %23 = vector.shape_cast %22 : vector<1x8x1xf32> to vector<8x1xf32>
      %24 = tpu.reciprocal %23 {approx = true} : vector<8x1xf32> -> vector<8x1xf32>
      %c1_15 = arith.constant 1 : index
      %c0_16 = arith.constant 0 : index
      %c0_17 = arith.constant 0 : index
      %25 = vector.load %arg8[%c1_15, %c0_16, %c0_17] : memref<4x8x8xf32, #tpu.memory_space<vmem>>, vector<1x8x8xf32>
      %26 = vector.shape_cast %25 : vector<1x8x8xf32> to vector<8x8xf32>
      %27 = vector.broadcast %24 : vector<8x1xf32> to vector<8x8xf32>
      %28 = arith.mulf %26, %27 : vector<8x8xf32>
      %c0_18 = arith.constant 0 : index
      %c0_19 = arith.constant 0 : index
      %c8 = arith.constant 8 : index
      %29 = vector.load %arg5[%c0_18, %c0_19, %c8] : memref<1x8x32xf32, #tpu.memory_space<vmem>>, vector<1x8x8xf32>
      %30 = vector.shape_cast %29 : vector<1x8x8xf32> to vector<8x8xf32>
      %31 = vector.shape_cast %28 : vector<8x8xf32> to vector<1x8x8xf32>
      tpu.vector_store %arg5[%c0_18, %c0_19, %c8], %31 {strides = array<i32>} : memref<1x8x32xf32, #tpu.memory_space<vmem>>, vector<1x8x8xf32>,
      %c2 = arith.constant 2 : index
      %c0_20 = arith.constant 0 : index
      %c0_21 = arith.constant 0 : index
      %32 = vector.load %arg7[%c2, %c0_20, %c0_21] : memref<4x8x1xf32, #tpu.memory_space<vmem>>, vector<1x8x1xf32>
      %33 = vector.shape_cast %32 : vector<1x8x1xf32> to vector<8x1xf32>
      %34 = tpu.reciprocal %33 {approx = true} : vector<8x1xf32> -> vector<8x1xf32>
      %c2_22 = arith.constant 2 : index
      %c0_23 = arith.constant 0 : index
      %c0_24 = arith.constant 0 : index
      %35 = vector.load %arg8[%c2_22, %c0_23, %c0_24] : memref<4x8x8xf32, #tpu.memory_space<vmem>>, vector<1x8x8xf32>
      %36 = vector.shape_cast %35 : vector<1x8x8xf32> to vector<8x8xf32>
      %37 = vector.broadcast %34 : vector<8x1xf32> to vector<8x8xf32>
      %38 = arith.mulf %36, %37 : vector<8x8xf32>
      %c0_25 = arith.constant 0 : index
      %c0_26 = arith.constant 0 : index
      %c16 = arith.constant 16 : index
      %39 = vector.load %arg5[%c0_25, %c0_26, %c16] : memref<1x8x32xf32, #tpu.memory_space<vmem>>, vector<1x8x8xf32>
      %40 = vector.shape_cast %39 : vector<1x8x8xf32> to vector<8x8xf32>
      %41 = vector.shape_cast %38 : vector<8x8xf32> to vector<1x8x8xf32>
      tpu.vector_store %arg5[%c0_25, %c0_26, %c16], %41 {strides = array<i32>} : memref<1x8x32xf32, #tpu.memory_space<vmem>>, vector<1x8x8xf32>,
      %c3 = arith.constant 3 : index
      %c0_27 = arith.constant 0 : index
      %c0_28 = arith.constant 0 : index
      %42 = vector.load %arg7[%c3, %c0_27, %c0_28] : memref<4x8x1xf32, #tpu.memory_space<vmem>>, vector<1x8x1xf32>
      %43 = vector.shape_cast %42 : vector<1x8x1xf32> to vector<8x1xf32>
      %44 = tpu.reciprocal %43 {approx = true} : vector<8x1xf32> -> vector<8x1xf32>
      %c3_29 = arith.constant 3 : index
      %c0_30 = arith.constant 0 : index
      %c0_31 = arith.constant 0 : index
      %45 = vector.load %arg8[%c3_29, %c0_30, %c0_31] : memref<4x8x8xf32, #tpu.memory_space<vmem>>, vector<1x8x8xf32>
      %46 = vector.shape_cast %45 : vector<1x8x8xf32> to vector<8x8xf32>
      %47 = vector.broadcast %44 : vector<8x1xf32> to vector<8x8xf32>
      %48 = arith.mulf %46, %47 : vector<8x8xf32>
      %c0_32 = arith.constant 0 : index
      %c0_33 = arith.constant 0 : index
      %c24 = arith.constant 24 : index
      %49 = vector.load %arg5[%c0_32, %c0_33, %c24] : memref<1x8x32xf32, #tpu.memory_space<vmem>>, vector<1x8x8xf32>
      %50 = vector.shape_cast %49 : vector<1x8x8xf32> to vector<8x8xf32>
      %51 = vector.shape_cast %48 : vector<8x8xf32> to vector<1x8x8xf32>
      tpu.vector_store %arg5[%c0_32, %c0_33, %c24], %51 {strides = array<i32>} : memref<1x8x32xf32, #tpu.memory_space<vmem>>, vector<1x8x8xf32>,
    } else {
    }
    return
  }
  func.func @transform_0(%arg0: i32, %arg1: i32, %arg2: i32) -> (i32, i32, i32) {
    %c0_i32 = arith.constant 0 : i32
    %c0_i32_0 = arith.constant 0 : i32
    return %arg0, %arg1, %c0_i32 : i32, i32, i32
  }
  func.func @transform_1(%arg0: i32, %arg1: i32, %arg2: i32) -> (i32, i32, i32) {
    %c0_i32 = arith.constant 0 : i32
    %c0_i32_0 = arith.constant 0 : i32
    return %arg0, %arg2, %c0_i32 : i32, i32, i32
  }
  func.func @transform_2(%arg0: i32, %arg1: i32, %arg2: i32) -> (i32, i32, i32) {
    %c0_i32 = arith.constant 0 : i32
    %c0_i32_0 = arith.constant 0 : i32
    return %arg0, %arg1, %c0_i32 : i32, i32, i32
  }
}

module attributes {stable_mosaic.version = 11 : i64} {
  func.func @_linear_direct_kernel(%arg0: i32, %arg1: i32, %arg2: memref<16x128xf32, #tpu.memory_space<vmem>>, %arg3: memref<128x32xf32, #tpu.memory_space<vmem>>, %arg4: memref<1x32xf32, #tpu.memory_space<vmem>>, %arg5: memref<16x32xf32, #tpu.memory_space<vmem>>, %arg6: memref<16x32xf32, #tpu.memory_space<vmem>>) attributes {dimension_semantics = [#tpu.dimension_semantics<parallel>, #tpu.dimension_semantics<parallel>], iteration_bounds = array<i64: 1, 1>, scalar_prefetch = 0 : i64, scratch_operands = 0 : i64, tpu.core_type = #tpu.core_type<tc>, window_params = [{transform_indices = @transform_0, window_bounds = array<i64: 16, 128>}, {transform_indices = @transform_1, window_bounds = array<i64: 128, 32>}, {transform_indices = @transform_2, window_bounds = array<i64: 1, 32>}, {transform_indices = @transform_3, window_bounds = array<i64: 16, 32>}, {transform_indices = @transform_4, window_bounds = array<i64: 16, 32>}]} {
    %c0 = arith.constant 0 : index
    %c0_0 = arith.constant 0 : index
    %0 = vector.load %arg2[%c0, %c0_0] : memref<16x128xf32, #tpu.memory_space<vmem>>, vector<16x128xf32>
    %c0_1 = arith.constant 0 : index
    %c0_2 = arith.constant 0 : index
    %1 = vector.load %arg3[%c0_1, %c0_2] : memref<128x32xf32, #tpu.memory_space<vmem>>, vector<128x32xf32>
    %cst = arith.constant dense<0.000000e+00> : vector<16x32xf32>
    %2 = tpu.matmul %0, %1, %cst {dimension_numbers = #tpu.dot_dimension_numbers<[1], [0], [0], [1], [0, 0, 1, 1], [], []>} : vector<16x128xf32>, vector<128x32xf32>, vector<16x32xf32> -> vector<16x32xf32>
    %c0_3 = arith.constant 0 : index
    %c0_4 = arith.constant 0 : index
    %3 = vector.load %arg4[%c0_3, %c0_4] : memref<1x32xf32, #tpu.memory_space<vmem>>, vector<1x32xf32>
    %4 = vector.broadcast %3 : vector<1x32xf32> to vector<16x32xf32>
    %5 = arith.addf %2, %4 : vector<16x32xf32>
    %c0_5 = arith.constant 0 : index
    %c0_6 = arith.constant 0 : index
    %6 = vector.load %arg5[%c0_5, %c0_6] : memref<16x32xf32, #tpu.memory_space<vmem>>, vector<16x32xf32>
    %7 = arith.addf %5, %6 : vector<16x32xf32>
    %c0_7 = arith.constant 0 : index
    %c0_8 = arith.constant 0 : index
    %8 = vector.load %arg6[%c0_7, %c0_8] : memref<16x32xf32, #tpu.memory_space<vmem>>, vector<16x32xf32>
    tpu.vector_store %arg6[%c0_7, %c0_8], %7 {strides = array<i32>} : memref<16x32xf32, #tpu.memory_space<vmem>>, vector<16x32xf32>,
    return
  }
  func.func @transform_0(%arg0: i32, %arg1: i32) -> (i32, i32) {
    %c0_i32 = arith.constant 0 : i32
    %c0_i32_0 = arith.constant 0 : i32
    return %arg0, %c0_i32 : i32, i32
  }
  func.func @transform_1(%arg0: i32, %arg1: i32) -> (i32, i32) {
    %c0_i32 = arith.constant 0 : i32
    %c0_i32_0 = arith.constant 0 : i32
    return %c0_i32, %arg1 : i32, i32
  }
  func.func @transform_2(%arg0: i32, %arg1: i32) -> (i32, i32) {
    %c0_i32 = arith.constant 0 : i32
    %c0_i32_0 = arith.constant 0 : i32
    return %c0_i32, %arg1 : i32, i32
  }
  func.func @transform_3(%arg0: i32, %arg1: i32) -> (i32, i32) {
    %c0_i32 = arith.constant 0 : i32
    return %arg0, %arg1 : i32, i32
  }
  func.func @transform_4(%arg0: i32, %arg1: i32) -> (i32, i32) {
    %c0_i32 = arith.constant 0 : i32
    return %arg0, %arg1 : i32, i32
  }
}

</mosaic_0001>

<llo_original>
// kernel: block_forward.7
$region0: #{block_forward.7}
  #allocation0 [shape = 'u32[]', space=smem, size = 0x4, offset = 0x4, fixed_abs, tag = 'smem constant byte address 0x4 - core index']
  #allocation1 [shape = 'u32[72,128]{1,0:T(1,128)}', space=vmem, size = 0x9000, scoped, tag = 'internal scratch']
  %s0 = inlined_call_operand.vmem [shape: f32[16,32], index: 0, kind: input, shape index: {}]
  %s1 = inlined_call_operand.vmem [shape: f32[32,32], index: 1, kind: input, shape index: {}]
  %s2 = inlined_call_operand.vmem [shape: f32[1,32], index: 2, kind: input, shape index: {}]
  %s3 = inlined_call_operand.vmem [shape: f32[16,32], index: 3, kind: input, shape index: {}]
  %s4 = inlined_call_operand.vmem [shape: f32[16,32], index: 4, kind: output, shape index: {}]
  %s5 = sld [smem:[#allocation0]]
  $region26: #{block_forward.7} parent=0
    _
  %s7 = ssub.s32 1, %s5
  %s8 = scalar_select 0, %s7, %s5
  // Predicated region
  $region2: #{block_forward.7} parent=0 // pred_check
    _
  $region3: #{block_forward.7} parent=0 // pred_check_branch
    %10 = sbr.rel (0) target = $region5
  $region4: #{block_forward.7} parent=0 // pred_region
    _
  $region5: #{block_forward.7} parent=0 // pred_fallthru
    _
  // Predicated region
  $region6: #{block_forward.7} parent=0 // pred_check
    _
  $region7: #{block_forward.7} parent=0 // pred_check_branch
    %12 = sbr.rel (0) target = $region9
  $region8: #{block_forward.7} parent=0 // pred_region
    _
  $region9: #{block_forward.7} parent=0 // pred_fallthru
    _
  // Predicated region
  $region10: #{block_forward.7} parent=0 // pred_check
    _
  $region11: #{block_forward.7} parent=0 // pred_check_branch
    %14 = sbr.rel (0) target = $region13
  $region12: #{block_forward.7} parent=0 // pred_region
    _
  $region13: #{block_forward.7} parent=0 // pred_fallthru
    _
  // Predicated region
  $region14: #{block_forward.7} parent=0 // pred_check
    _
  $region15: #{block_forward.7} parent=0 // pred_check_branch
    %16 = sbr.rel (0) target = $region17
  $region16: #{block_forward.7} parent=0 // pred_region
    _
  $region17: #{block_forward.7} parent=0 // pred_fallthru
    _
  %v17 = vld [vmem:[%s0] sm:$0xff]
  %v18 = vld [vmem:[%s0 + $0x8] sm:$0xff]
  %v19 = vld [vmem:[%s1] sm:$0xff]
  %v20 = vld [vmem:[%s1 + $0x8] sm:$0xff]
  %v21 = vld [vmem:[%s1 + $0x10] sm:$0xff]
  %v22 = vld [vmem:[%s1 + $0x18] sm:$0xff]
  %v23 = vld [vmem:[%s2] sm:$0x1]
  %v25 = vperm.slane %v23, 0
  %vm27 = vcmask 261120
  %v29 = vsel %vm27, %v17, 0
  %v32 = vsel %vm27, %v18, 0
  %34 = vmatpush.msra.mxu0 0.0
  %35 = vmatpush.msra.mxu0 0.0
  %36 = vmatpush.msra.mxu0 0.0
  %37 = vmatpush.msra.mxu0 0.0
  %38 = vmatpush.msra.mxu0 0.0
  %39 = vmatpush.msra.mxu0 0.0
  %40 = vmatpush.msra.mxu0 0.0
  %41 = vmatpush.msra.mxu0 0.0
  %42 = vmatpush.msra.mxu0 0.0
  %43 = vmatpush.msra.mxu0 0.0
  %44 = vmatpush.msra.mxu0 0.0
  %45 = vmatpush.msra.mxu0 0.0
  %46 = vmatpush.msra.mxu0 %v22
  %47 = vmatpush.msra.mxu0 %v21
  %48 = vmatpush.msra.mxu0 %v20
  %49 = vmatpush.msra.mxu0 %v19
  %50 = vmatmul.f32.gmra.mxu0 %v29
  %v51 = vpop.f32.mrf.mxu0
  %v52 = vadd.f32 %v25, %v51
  %53 = vmatmul.f32.gmra.mxu0 %v32
  %v54 = vpop.f32.mrf.mxu0
  %v55 = vadd.f32 %v25, %v54
  %56 = vdwg.mxu0
  %v57 = vld [vmem:[%s3] sm:$0xff]
  %v58 = vld [vmem:[%s3 + $0x8] sm:$0xff]
  %v59 = vadd.f32 %v52, %v57
  %v60 = vadd.f32 %v55, %v58
  %61 = vst.msk [vmem:[%s4] sm:$0xff] %vm27, %v59
  %62 = vst.msk [vmem:[%s4 + $0x8] sm:$0xff] %vm27, %v60
  // Predicated region
  $region18: #{block_forward.7} parent=0 // pred_check
    _
  $region19: #{block_forward.7} parent=0 // pred_check_branch
    %64 = sbr.rel (0) target = $region21
  $region20: #{block_forward.7} parent=0 // pred_region
    _
  $region21: #{block_forward.7} parent=0 // pred_fallthru
    _
  // Predicated region
  $region22: #{block_forward.7} parent=0 // pred_check
    _
  $region23: #{block_forward.7} parent=0 // pred_check_branch
    %66 = sbr.rel (0) target = $region25
  $region24: #{block_forward.7} parent=0 // pred_region
    _
  $region25: #{block_forward.7} parent=0 // pred_fallthru
    _

// kernel: block_forward.8
$region0: #{block_forward.8}
  #allocation0 [shape = 'u32[]', space=smem, size = 0x4, offset = 0x4, fixed_abs, tag = 'smem constant byte address 0x4 - core index']
  #allocation1 [shape = 'u32[72,128]{1,0:T(1,128)}', space=vmem, size = 0x9000, scoped, tag = 'internal scratch']
  #allocation2 [shape = 'f32[16,32]{1,0:T(8,128)}', space=vmem, size = 0x2000, scoped, tag = 'scratch operand']
  %s0 = inlined_call_operand.vmem [shape: f32[16,32], index: 0, kind: input, shape index: {}]
  %s1 = inlined_call_operand.vmem [shape: f32[32,128], index: 1, kind: input, shape index: {}]
  %s2 = inlined_call_operand.vmem [shape: f32[1,128], index: 2, kind: input, shape index: {}]
  %s3 = inlined_call_operand.vmem [shape: f32[1,32], index: 3, kind: input, shape index: {}]
  %s4 = inlined_call_operand.vmem [shape: f32[1,32], index: 4, kind: input, shape index: {}]
  %s5 = inlined_call_operand.vmem [shape: f32[16,128], index: 5, kind: output, shape index: {}]
  %s6 = sld [smem:[#allocation0]]
  $region34: #{block_forward.8} parent=0
    _
  %s8 = ssub.s32 1, %s6
  %s9 = scalar_select 0, %s8, %s6
  // Predicated region
  $region2: #{block_forward.8} parent=0 // pred_check
    _
  $region3: #{block_forward.8} parent=0 // pred_check_branch
    %11 = sbr.rel (0) target = $region5
  $region4: #{block_forward.8} parent=0 // pred_region
    _
  $region5: #{block_forward.8} parent=0 // pred_fallthru
    _
  // Predicated region
  $region6: #{block_forward.8} parent=0 // pred_check
    _
  $region7: #{block_forward.8} parent=0 // pred_check_branch
    %13 = sbr.rel (0) target = $region9
  $region8: #{block_forward.8} parent=0 // pred_region
    _
  $region9: #{block_forward.8} parent=0 // pred_fallthru
    _
  // Predicated region
  $region10: #{block_forward.8} parent=0 // pred_check
    _
  $region11: #{block_forward.8} parent=0 // pred_check_branch
    %15 = sbr.rel (0) target = $region13
  $region12: #{block_forward.8} parent=0 // pred_region
    _
  $region13: #{block_forward.8} parent=0 // pred_fallthru
    _
  // Predicated region
  $region14: #{block_forward.8} parent=0 // pred_check
    _
  $region15: #{block_forward.8} parent=0 // pred_check_branch
    %17 = sbr.rel (0) target = $region17
  $region16: #{block_forward.8} parent=0 // pred_region
    _
  $region17: #{block_forward.8} parent=0 // pred_fallthru
    _
  // Predicated region
  $region18: #{block_forward.8} parent=0 // pred_check
    _
  $region19: #{block_forward.8} parent=0 // pred_check_branch
    %19 = sbr.rel (0) target = $region21
  $region20: #{block_forward.8} parent=0 // pred_region
    _
  $region21: #{block_forward.8} parent=0 // pred_fallthru
    _
  %p20 = scmp.eq.s32.totalorder 0, 0
  // Predicated region
  $region22: #{block_forward.8} parent=0 // pred_check
    %p21 = pneg %p20
  $region23: #{block_forward.8} parent=0 // pred_check_branch
    %23 = sbr.rel (%p21) target = $region25
  $region24: #{block_forward.8} parent=0 // pred_region
    %v24 = vld [vmem:[%s0] sm:$0xff]
    %v25 = vld [vmem:[%s0 + $0x8] sm:$0xff]
    %vm26 = vcmask 261120
    %v27 = vsel %vm26, %v24, 0.0
    %28 = vadd.xlane.f32.xlu0 %v27
    %v29 = vpop.xlane.xlu0 %28
    %v30 = vsel %vm26, %v25, 0.0
    %31 = vadd.xlane.f32.xlu0 %v30
    %v32 = vpop.xlane.xlu0 %31
    %v33 = vrcp.pop 32.0
    %v34 = vmul.f32 32.0, %v33
    %v35 = vsub.f32 1.0, %v34
    %v36 = vmul.f32 %v33, %v35
    %v37 = vadd.f32 %v33, %v36
    %vm38 = vweird.f32 %v33
    %v39 = vsel %vm38, %v33, %v37
    %v40 = vmul.f32 %v29, %v39
    %v41 = vmul.f32 %v32, %v39
    %v42 = vsub.f32 %v24, %v40
    %v43 = vsub.f32 %v25, %v41
    %v44 = vmul.f32 %v42, %v42
    %v45 = vmul.f32 %v43, %v43
    %v46 = vsel %vm26, %v44, 0.0
    %47 = vadd.xlane.f32.xlu0 %v46
    %v48 = vpop.xlane.xlu0 %47
    %v49 = vsel %vm26, %v45, 0.0
    %50 = vadd.xlane.f32.xlu0 %v49
    %v51 = vpop.xlane.xlu0 %50
    %v52 = vmul.f32 %v48, %v39
    %v53 = vmul.f32 %v51, %v39
    %v54 = vadd.f32 %v52, 1e-05
    %v55 = vadd.f32 %v53, 1e-05
    %v56 = vrsqrt.pop %v54
    %v57 = vmul.f32 %v56, %v54
    %v58 = vmul.f32 %v57, %v56
    %v59 = vmul.f32 0.5, %v58
    %v60 = vsub.f32 1.5, %v59
    %v61 = vmul.f32 %v56, %v60
    %vm62 = vweird.f32 %v54
    %vm63 = vweird.f32 %v56
    %vm64 = vmor %vm62, %vm63
    %v65 = vsel %vm64, %v56, %v61
    %v66 = vrsqrt.pop %v55
    %v67 = vmul.f32 %v66, %v55
    %v68 = vmul.f32 %v67, %v66
    %v69 = vmul.f32 0.5, %v68
    %v70 = vsub.f32 1.5, %v69
    %v71 = vmul.f32 %v66, %v70
    %vm72 = vweird.f32 %v55
    %vm73 = vweird.f32 %v66
    %vm74 = vmor %vm72, %vm73
    %v75 = vsel %vm74, %v66, %v71
    %v76 = vmul.f32 %v42, %v65
    %v77 = vmul.f32 %v43, %v75
    %v78 = vld [vmem:[%s3] sm:$0x1]
    %v80 = vperm.slane %v78, 0
    %v82 = vmul.f32 %v80, %v76
    %v83 = vmul.f32 %v80, %v77
    %v84 = vld [vmem:[%s4] sm:$0x1]
    %v86 = vperm.slane %v84, 0
    %v88 = vadd.f32 %v82, %v86
    %v89 = vadd.f32 %v83, %v86
    %90 = vst.msk [vmem:[#allocation2] sm:$0xff] %vm26, %v88
    %91 = vst.msk [vmem:[#allocation2 + $0x8] sm:$0xff] %vm26, %v89
  $region25: #{block_forward.8} parent=0 // pred_fallthru
    _
  %v92 = vld [vmem:[#allocation2] sm:$0xff]
  %v93 = vld [vmem:[#allocation2 + $0x8] sm:$0xff]
  %v94 = vld [vmem:[%s1] sm:$0xff]
  %v95 = vld [vmem:[%s1 + $0x8] sm:$0xff]
  %v96 = vld [vmem:[%s1 + $0x10] sm:$0xff]
  %v97 = vld [vmem:[%s1 + $0x18] sm:$0xff]
  %v98 = vld [vmem:[%s2] sm:$0x1]
  %v100 = vperm.slane %v98, 0
  %vm102 = vcmask 261120
  %v104 = vsel %vm102, %v92, 0
  %v107 = vsel %vm102, %v93, 0
  %109 = vmatpush.msra.mxu0 0.0
  %110 = vmatpush.msra.mxu0 0.0
  %111 = vmatpush.msra.mxu0 0.0
  %112 = vmatpush.msra.mxu0 0.0
  %113 = vmatpush.msra.mxu0 0.0
  %114 = vmatpush.msra.mxu0 0.0
  %115 = vmatpush.msra.mxu0 0.0
  %116 = vmatpush.msra.mxu0 0.0
  %117 = vmatpush.msra.mxu0 0.0
  %118 = vmatpush.msra.mxu0 0.0
  %119 = vmatpush.msra.mxu0 0.0
  %120 = vmatpush.msra.mxu0 0.0
  %121 = vmatpush.msra.mxu0 %v97
  %122 = vmatpush.msra.mxu0 %v96
  %123 = vmatpush.msra.mxu0 %v95
  %124 = vmatpush.msra.mxu0 %v94
  %125 = vmatmul.f32.gmra.mxu0 %v104
  %v126 = vpop.f32.mrf.mxu0
  %v127 = vadd.f32 %v100, %v126
  %128 = vmatmul.f32.gmra.mxu0 %v107
  %v129 = vpop.f32.mrf.mxu0
  %v130 = vadd.f32 %v100, %v129
  %131 = vdwg.mxu0
  %v132 = vmul.f32 %v127, 0.5
  %v133 = vmul.f32 %v130, 0.5
  %v134 = vmul.f32 %v127, %v127
  %v135 = vmul.f32 %v130, %v130
  %v136 = vmul.f32 %v127, %v134
  %v137 = vmul.f32 %v130, %v135
  %v138 = vmul.f32 %v136, 0.044715
  %v139 = vmul.f32 %v137, 0.044715
  %v140 = vadd.f32 %v127, %v138
  %v141 = vadd.f32 %v130, %v139
  %v142 = vmul.f32 %v140, 0.7978846
  %v143 = vmul.f32 %v141, 0.7978846
  %v144 = vtanh.pop %v142
  %v145 = vtanh.pop %v143
  %v146 = vadd.f32 %v144, 1.0
  %v147 = vadd.f32 %v145, 1.0
  %v148 = vmul.f32 %v132, %v146
  %v149 = vmul.f32 %v133, %v147
  %150 = vst [vmem:[%s5] sm:$0xff] %v148
  %151 = vst [vmem:[%s5 + $0x8] sm:$0xff] %v149
  // Predicated region
  $region26: #{block_forward.8} parent=0 // pred_check
    _
  $region27: #{block_forward.8} parent=0 // pred_check_branch
    %153 = sbr.rel (0) target = $region29
  $region28: #{block_forward.8} parent=0 // pred_region
    _
  $region29: #{block_forward.8} parent=0 // pred_fallthru
    _
  // Predicated region
  $region30: #{block_forward.8} parent=0 // pred_check
    _
  $region31: #{block_forward.8} parent=0 // pred_check_branch
    %155 = sbr.rel (0) target = $region33
  $region32: #{block_forward.8} parent=0 // pred_region
    _
  $region33: #{block_forward.8} parent=0 // pred_fallthru
    _

// kernel: block_forward.5
$region0: #{block_forward.5}
  #allocation0 [shape = 'u32[]', space=smem, size = 0x4, offset = 0x4, fixed_abs, tag = 'smem constant byte address 0x4 - core index']
  #allocation1 [shape = 'u32[72,128]{1,0:T(1,128)}', space=vmem, size = 0x9000, scoped, tag = 'internal scratch']
  #allocation2 [shape = 'f32[16,32]{1,0:T(8,128)}', space=vmem, size = 0x2000, scoped, tag = 'scratch operand']
  %s0 = inlined_call_operand.hbm [shape: f32[16,32], index: 0, kind: input, shape index: {}]
  %s1 = inlined_call_operand.hbm [shape: f32[32,96], index: 1, kind: input, shape index: {}]
  %s2 = inlined_call_operand.vmem [shape: f32[1,96], index: 2, kind: input, shape index: {}]
  %s3 = inlined_call_operand.vmem [shape: f32[1,32], index: 3, kind: input, shape index: {}]
  %s4 = inlined_call_operand.vmem [shape: f32[1,32], index: 4, kind: input, shape index: {}]
  %s5 = inlined_call_operand.vmem [shape: f32[16,96], index: 5, kind: output, shape index: {}]
  %s6 = sld [smem:[#allocation0]]
  $region42: #{block_forward.5} parent=0
    _
  %s8 = ssub.s32 1, %s6
  %s9 = scalar_select 0, %s8, %s6
  $region1: #{block_forward.5} parent=0
    #allocation3 [shape = 'u8[8192]{0}', space=vmem, size = 0x2000, scoped, tag = 'input window, operand 0, single buffered']
    #allocation4 [shape = 's32[1]{0}', space=sflag, size = 0x4, scoped, tag = 'scoped memory for block_forward.5']
    #allocation5 [shape = 'u8[16384]{0}', space=vmem, size = 0x4000, scoped, tag = 'input window, operand 1, single buffered']
    #allocation6 [shape = 's32[1]{0}', space=sflag, size = 0x4, scoped, tag = 'scoped memory for block_forward.5']
    %10 = vsyncpa [#allocation4], 0
    %11 = vsyncpa [#allocation6], 0
    // Predicated region
    $region2: #{block_forward.5} parent=1 // pred_check
      _
    $region3: #{block_forward.5} parent=1 // pred_check_branch
      %13 = sbr.rel (0) target = $region5
    $region4: #{block_forward.5} parent=1 // pred_region
      %15 = vsyncadd [#allocation4], 0
      %s16 = sshll.u32 %s0, 4
      %s17 = int_to_ptr.hbm [resolvable:$true] %s16
      %s18 = sshll.u32 [#allocation3], 4
      %s19 = int_to_ptr.vmem [resolvable:$true] %s18
      %24 = dma.hbm_to_vmem [thread:$0]  %s17, 256, %s19, [#allocation4], 128, 128, 8
    $region5: #{block_forward.5} parent=1 // pred_fallthru
      _
    // Predicated region
    $region6: #{block_forward.5} parent=1 // pred_check
      _
    $region7: #{block_forward.5} parent=1 // pred_check_branch
      %26 = sbr.rel (0) target = $region9
    $region8: #{block_forward.5} parent=1 // pred_region
      %28 = vsyncadd [#allocation6], 0
      %s29 = sshll.u32 %s1, 4
      %s30 = int_to_ptr.hbm [resolvable:$true] %s29
      %s31 = sshll.u32 [#allocation5], 4
      %s32 = int_to_ptr.vmem [resolvable:$true] %s31
      %37 = dma.hbm_to_vmem [thread:$0]  %s30, 512, %s32, [#allocation6], 128, 128, 8
    $region9: #{block_forward.5} parent=1 // pred_fallthru
      _
    // Predicated region
    $region10: #{block_forward.5} parent=1 // pred_check
      _
    $region11: #{block_forward.5} parent=1 // pred_check_branch
      %39 = sbr.rel (0) target = $region13
    $region12: #{block_forward.5} parent=1 // pred_region
      _
    $region13: #{block_forward.5} parent=1 // pred_fallthru
      _
    // Predicated region
    $region14: #{block_forward.5} parent=1 // pred_check
      _
    $region15: #{block_forward.5} parent=1 // pred_check_branch
      %41 = sbr.rel (0) target = $region17
    $region16: #{block_forward.5} parent=1 // pred_region
      _
    $region17: #{block_forward.5} parent=1 // pred_fallthru
      _
    // Predicated region
    $region18: #{block_forward.5} parent=1 // pred_check
      _
    $region19: #{block_forward.5} parent=1 // pred_check_branch
      %43 = sbr.rel (0) target = $region21
    $region20: #{block_forward.5} parent=1 // pred_region
      _
    $region21: #{block_forward.5} parent=1 // pred_fallthru
      _
    // Predicated region
    $region22: #{block_forward.5} parent=1 // pred_check
      _
    $region23: #{block_forward.5} parent=1 // pred_check_branch
      %45 = sbr.rel (0) target = $region25
    $region24: #{block_forward.5} parent=1 // pred_region
      %47 = dma.done [#allocation4], 256
    $region25: #{block_forward.5} parent=1 // pred_fallthru
      _
    // Predicated region
    $region26: #{block_forward.5} parent=1 // pred_check
      _
    $region27: #{block_forward.5} parent=1 // pred_check_branch
      %49 = sbr.rel (0) target = $region29
    $region28: #{block_forward.5} parent=1 // pred_region
      %51 = dma.done [#allocation6], 512
    $region29: #{block_forward.5} parent=1 // pred_fallthru
      _
    %p52 = scmp.eq.s32.totalorder 0, 0
    // Predicated region
    $region30: #{block_forward.5} parent=1 // pred_check
      %p53 = pneg %p52
    $region31: #{block_forward.5} parent=1 // pred_check_branch
      %55 = sbr.rel (%p53) target = $region33
    $region32: #{block_forward.5} parent=1 // pred_region
      %v56 = vld [vmem:[#allocation3] sm:$0xff]
      %v57 = vld [vmem:[#allocation3 + $0x8] sm:$0xff]
      %vm58 = vcmask 261120
      %v59 = vsel %vm58, %v56, 0.0
      %60 = vadd.xlane.f32.xlu0 %v59
      %v61 = vpop.xlane.xlu0 %60
      %v62 = vsel %vm58, %v57, 0.0
      %63 = vadd.xlane.f32.xlu0 %v62
      %v64 = vpop.xlane.xlu0 %63
      %v65 = vrcp.pop 32.0
      %v66 = vmul.f32 32.0, %v65
      %v67 = vsub.f32 1.0, %v66
      %v68 = vmul.f32 %v65, %v67
      %v69 = vadd.f32 %v65, %v68
      %vm70 = vweird.f32 %v65
      %v71 = vsel %vm70, %v65, %v69
      %v72 = vmul.f32 %v61, %v71
      %v73 = vmul.f32 %v64, %v71
      %v74 = vsub.f32 %v56, %v72
      %v75 = vsub.f32 %v57, %v73
      %v76 = vmul.f32 %v74, %v74
      %v77 = vmul.f32 %v75, %v75
      %v78 = vsel %vm58, %v76, 0.0
      %79 = vadd.xlane.f32.xlu0 %v78
      %v80 = vpop.xlane.xlu0 %79
      %v81 = vsel %vm58, %v77, 0.0
      %82 = vadd.xlane.f32.xlu0 %v81
      %v83 = vpop.xlane.xlu0 %82
      %v84 = vmul.f32 %v80, %v71
      %v85 = vmul.f32 %v83, %v71
      %v86 = vadd.f32 %v84, 1e-05
      %v87 = vadd.f32 %v85, 1e-05
      %v88 = vrsqrt.pop %v86
      %v89 = vmul.f32 %v88, %v86
      %v90 = vmul.f32 %v89, %v88
      %v91 = vmul.f32 0.5, %v90
      %v92 = vsub.f32 1.5, %v91
      %v93 = vmul.f32 %v88, %v92
      %vm94 = vweird.f32 %v86
      %vm95 = vweird.f32 %v88
      %vm96 = vmor %vm94, %vm95
      %v97 = vsel %vm96, %v88, %v93
      %v98 = vrsqrt.pop %v87
      %v99 = vmul.f32 %v98, %v87
      %v100 = vmul.f32 %v99, %v98
      %v101 = vmul.f32 0.5, %v100
      %v102 = vsub.f32 1.5, %v101
      %v103 = vmul.f32 %v98, %v102
      %vm104 = vweird.f32 %v87
      %vm105 = vweird.f32 %v98
      %vm106 = vmor %vm104, %vm105
      %v107 = vsel %vm106, %v98, %v103
      %v108 = vmul.f32 %v74, %v97
      %v109 = vmul.f32 %v75, %v107
      %v110 = vld [vmem:[%s3] sm:$0x1]
      %v112 = vperm.slane %v110, 0
      %v114 = vmul.f32 %v112, %v108
      %v115 = vmul.f32 %v112, %v109
      %v116 = vld [vmem:[%s4] sm:$0x1]
      %v118 = vperm.slane %v116, 0
      %v120 = vadd.f32 %v114, %v118
      %v121 = vadd.f32 %v115, %v118
      %122 = vst.msk [vmem:[#allocation2] sm:$0xff] %vm58, %v120
      %123 = vst.msk [vmem:[#allocation2 + $0x8] sm:$0xff] %vm58, %v121
    $region33: #{block_forward.5} parent=1 // pred_fallthru
      _
    %v124 = vld [vmem:[#allocation2] sm:$0xff]
    %v125 = vld [vmem:[#allocation2 + $0x8] sm:$0xff]
    %v126 = vld [vmem:[#allocation5] sm:$0xff]
    %v127 = vld [vmem:[#allocation5 + $0x8] sm:$0xff]
    %v128 = vld [vmem:[#allocation5 + $0x10] sm:$0xff]
    %v129 = vld [vmem:[#allocation5 + $0x18] sm:$0xff]
    %v130 = vld [vmem:[%s2] sm:$0x1]
    %v132 = vperm.slane %v130, 0
    %vm134 = vcmask 261120
    %v136 = vsel %vm134, %v124, 0
    %v139 = vsel %vm134, %v125, 0
    %141 = vmatpush.msra.mxu0 0.0
    %142 = vmatpush.msra.mxu0 0.0
    %143 = vmatpush.msra.mxu0 0.0
    %144 = vmatpush.msra.mxu0 0.0
    %145 = vmatpush.msra.mxu0 0.0
    %146 = vmatpush.msra.mxu0 0.0
    %147 = vmatpush.msra.mxu0 0.0
    %148 = vmatpush.msra.mxu0 0.0
    %149 = vmatpush.msra.mxu0 0.0
    %150 = vmatpush.msra.mxu0 0.0
    %151 = vmatpush.msra.mxu0 0.0
    %152 = vmatpush.msra.mxu0 0.0
    %153 = vmatpush.msra.mxu0 %v129
    %154 = vmatpush.msra.mxu0 %v128
    %155 = vmatpush.msra.mxu0 %v127
    %156 = vmatpush.msra.mxu0 %v126
    %157 = vmatmul.f32.gmra.mxu0 %v136
    %v158 = vpop.f32.mrf.mxu0
    %v159 = vadd.f32 %v132, %v158
    %160 = vmatmul.f32.gmra.mxu0 %v139
    %v161 = vpop.f32.mrf.mxu0
    %v162 = vadd.f32 %v132, %v161
    %163 = vdwg.mxu0
    %vm164 = vcmask 785408
    %165 = vst.msk [vmem:[%s5] sm:$0xff] %vm164, %v159
    %166 = vst.msk [vmem:[%s5 + $0x8] sm:$0xff] %vm164, %v162
    // Predicated region
    $region34: #{block_forward.5} parent=1 // pred_check
      _
    $region35: #{block_forward.5} parent=1 // pred_check_branch
      %168 = sbr.rel (0) target = $region37
    $region36: #{block_forward.5} parent=1 // pred_region
      _
    $region37: #{block_forward.5} parent=1 // pred_fallthru
      _
    // Predicated region
    $region38: #{block_forward.5} parent=1 // pred_check
      _
    $region39: #{block_forward.5} parent=1 // pred_check_branch
      %170 = sbr.rel (0) target = $region41
    $region40: #{block_forward.5} parent=1 // pred_region
      _
    $region41: #{block_forward.5} parent=1 // pred_fallthru
      _
    %171 = vsyncpa [#allocation4], 1
    %172 = vsyncpa [#allocation6], 1

// kernel: block_forward.6
$region0: #{block_forward.6}
  #allocation0 [shape = 'u32[]', space=smem, size = 0x4, offset = 0x4, fixed_abs, tag = 'smem constant byte address 0x4 - core index']
  #allocation1 [shape = 'u32[72,128]{1,0:T(1,128)}', space=vmem, size = 0x9000, scoped, tag = 'internal scratch']
  #allocation2 [shape = 'f32[4,8,1]{2,1,0:T(8,128)}', space=vmem, size = 0x4000, scoped, tag = 'scratch operand']
  #allocation3 [shape = 'f32[4,8,1]{2,1,0:T(8,128)}', space=vmem, size = 0x4000, scoped, tag = 'scratch operand']
  #allocation4 [shape = 'f32[4,8,8]{2,1,0:T(8,128)}', space=vmem, size = 0x4000, scoped, tag = 'scratch operand']
  %s0 = inlined_call_operand.vmem [shape: f32[2,8,96], index: 0, kind: input, shape index: {}, may-alias: {0,1}]
  %s1 = inlined_call_operand.vmem [shape: f32[2,8,96], index: 1, kind: input, shape index: {}, may-alias: {0,1}]
  %s2 = inlined_call_operand.vmem [shape: f32[2,8,32], index: 2, kind: output, shape index: {}]
  %s3 = sld [smem:[#allocation0]]
  $region53: #{block_forward.6} parent=0
    _
  %s5 = ssub.s32 1, %s3
  %s6 = scalar_select 0, %s5, %s3
  loop: start=0, step=1, limit=4
  $region2: #{block_forward.6} parent=0 // loop_pre_header
    _
  $region3: #{block_forward.6} parent=0 // loop_header
    %s8 = sphi 0, %s12
    %p9 = scmp.ge.s32.totalorder %s8, 4
    %s15 = sphi 0, %s34
    %s16 = sphi 0, %s30
    %s17 = sphi 0, %s26
    %s18 = sphi 0, %s15
    %s19 = sphi 0, %s16
    %s20 = sphi 0, %s17
    %s21 = sphi 0, %s18
    %s22 = sphi 0, %s19
    %s23 = sphi 0, %s20
    %s39 = sphi 0, %s41
    %s42 = sphi 0, %s39
    %s43 = sphi 0, %s42
    %s59 = sphi 0, %s43
    %s67 = sphi 0, %s69
    %s70 = sphi 0, %s67
    %s71 = sphi 0, %s70
    %s87 = sphi 0, %s71
    %s95 = sphi 0, %s97
    %s98 = sphi 0, %s95
    %s99 = sphi 0, %s98
    %s115 = sphi 0, %s99
  $region4: #{block_forward.6} parent=0 // loop_header_branch
    %11 = sbr.rel (%p9) target = $region8
  $region5: #{block_forward.6} parent=0 // loop_body
    %s13 = ssub.s32 %s8, 1
    %s14 = ssub.s32 %s8, 2
    %s24 = sadd.s32 1, %s17
    %p25 = scmp.ge.s32.totalorder %s24, 1
    %s26 = scalar_select %p25, 0, %s24
    %s27 = sadd.s32 1, %s16
    %s28 = scalar_select %p25, %s27, %s16
    %p29 = scmp.ge.s32.totalorder %s28, 1
    %s30 = scalar_select %p29, 0, %s28
    %s31 = sadd.s32 1, %s15
    %s32 = scalar_select %p29, %s31, %s15
    %p33 = scmp.ge.s32.totalorder %s32, 2
    %s34 = scalar_select %p33, 0, %s32
    %s35 = ssub.s32 %s15, %s34
    %s36 = ssub.s32 %s16, %s30
    %s37 = sor.u32 %s35, %s36
    %p38 = scmp.eq.s32.totalorder %s37, 0
    %s40 = sadd.s32 %s39, 1
    %s41 = scalar_select %p38, %s39, %s40
    %p44 = pneg %p38
    %p45 = scmp.eq.s32.totalorder %s8, 1
    %p46 = por %p44, %p45
    %p47 = scmp.ne.s32.totalorder %s39, %s42
    %p48 = scmp.eq.s32.totalorder %s8, 0
    %p49 = por %p47, %p48
    %p50 = scmp.ne.s32.totalorder %s39, %s42
    %p51 = scmp.eq.s32.totalorder %s13, 1
    %p52 = por %p50, %p51
    %p53 = scmp.ne.s32.totalorder %s42, %s43
    %p54 = scmp.eq.s32.totalorder %s13, 0
    %p55 = por %p53, %p54
    %p56 = scmp.ne.s32.totalorder %s42, %s43
    %p57 = scmp.eq.s32.totalorder %s14, 1
    %p58 = por %p56, %p57
    %p60 = scmp.ne.s32.totalorder %s43, %s59
    %p61 = scmp.eq.s32.totalorder %s14, 0
    %p62 = por %p60, %p61
    %s63 = ssub.s32 %s15, %s34
    %s64 = ssub.s32 %s17, %s26
    %s65 = sor.u32 %s63, %s64
    %p66 = scmp.eq.s32.totalorder %s65, 0
    %s68 = sadd.s32 %s67, 1
    %s69 = scalar_select %p66, %s67, %s68
    %p72 = pneg %p66
    %p73 = scmp.eq.s32.totalorder %s8, 1
    %p74 = por %p72, %p73
    %p75 = scmp.ne.s32.totalorder %s67, %s70
    %p76 = scmp.eq.s32.totalorder %s8, 0
    %p77 = por %p75, %p76
    %p78 = scmp.ne.s32.totalorder %s67, %s70
    %p79 = scmp.eq.s32.totalorder %s13, 1
    %p80 = por %p78, %p79
    %p81 = scmp.ne.s32.totalorder %s70, %s71
    %p82 = scmp.eq.s32.totalorder %s13, 0
    %p83 = por %p81, %p82
    %p84 = scmp.ne.s32.totalorder %s70, %s71
    %p85 = scmp.eq.s32.totalorder %s14, 1
    %p86 = por %p84, %p85
    %p88 = scmp.ne.s32.totalorder %s71, %s87
    %p89 = scmp.eq.s32.totalorder %s14, 0
    %p90 = por %p88, %p89
    %s91 = ssub.s32 %s15, %s34
    %s92 = ssub.s32 %s16, %s30
    %s93 = sor.u32 %s91, %s92
    %p94 = scmp.eq.s32.totalorder %s93, 0
    %s96 = sadd.s32 %s95, 1
    %s97 = scalar_select %p94, %s95, %s96
    %p100 = pneg %p94
    %p101 = scmp.eq.s32.totalorder %s8, 1
    %p102 = por %p100, %p101
    %p103 = scmp.ne.s32.totalorder %s95, %s98
    %p104 = scmp.eq.s32.totalorder %s8, 0
    %p105 = por %p103, %p104
    %p106 = scmp.ne.s32.totalorder %s95, %s98
    %p107 = scmp.eq.s32.totalorder %s13, 1
    %p108 = por %p106, %p107
    %p109 = scmp.ne.s32.totalorder %s98, %s99
    %p110 = scmp.eq.s32.totalorder %s13, 0
    %p111 = por %p109, %p110
    %p112 = scmp.ne.s32.totalorder %s98, %s99
    %p113 = scmp.eq.s32.totalorder %s14, 1
    %p114 = por %p112, %p113
    %p116 = scmp.ne.s32.totalorder %s99, %s115
    %p117 = scmp.eq.s32.totalorder %s14, 0
    %p118 = por %p116, %p117
    %p119 = scmp.le.s32.totalorder 1, %s8
    %p120 = scmp.lt.s32.totalorder %s8, 3
    %p121 = pnand %p119, %p120
    %p122 = pneg %p121
    // Predicated region
    $region9: #{block_forward.6} parent=5 // pred_check
      _
    $region10: #{block_forward.6} parent=5 // pred_check_branch
      %124 = sbr.rel (%p121) target = $region12
    $region11: #{block_forward.6} parent=5 // pred_region
      %s125 = ssub.s32 %s8, 1
    $region12: #{block_forward.6} parent=5 // pred_fallthru
      _
    %p126 = scmp.lt.s32.totalorder %s8, 2
    // Predicated region
    $region13: #{block_forward.6} parent=5 // pred_check
      %p127 = pneg %p126
    $region14: #{block_forward.6} parent=5 // pred_check_branch
      %129 = sbr.rel (%p127) target = $region16
    $region15: #{block_forward.6} parent=5 // pred_region
      // Predicated region
      $region17: #{block_forward.6} parent=15 // pred_check
        %p130 = pneg %p49
      $region18: #{block_forward.6} parent=15 // pred_check_branch
        %132 = sbr.rel (%p130) target = $region20
      $region19: #{block_forward.6} parent=15 // pred_region
        %p133 = scmp.lt.s32.totalorder %s15, 1
        %s134 = scalar_select %p133, %s15, 1
        %p135 = scmp.lt.s32.totalorder %s16, 0
        %s136 = scalar_select %p135, %s16, 0
        %s137 = sadd.s32 %s136, %s134
        %s138 = smul.addr %s137, 8
        %s139 = scalar_lea.vmem %s0, %s138
      $region20: #{block_forward.6} parent=15 // pred_fallthru
        _
      // Predicated region
      $region21: #{block_forward.6} parent=15 // pred_check
        %p140 = pneg %p77
      $region22: #{block_forward.6} parent=15 // pred_check_branch
        %142 = sbr.rel (%p140) target = $region24
      $region23: #{block_forward.6} parent=15 // pred_region
        %p143 = scmp.lt.s32.totalorder %s15, 1
        %s144 = scalar_select %p143, %s15, 1
        %p145 = scmp.lt.s32.totalorder %s17, 0
        %s146 = scalar_select %p145, %s17, 0
        %s147 = sadd.s32 %s146, %s144
        %s148 = smul.addr %s147, 8
        %s149 = scalar_lea.vmem %s1, %s148
      $region24: #{block_forward.6} parent=15 // pred_fallthru
        _
    $region16: #{block_forward.6} parent=5 // pred_fallthru
      _
    %p150 = scmp.le.s32.totalorder 1, %s8
    %p151 = scmp.lt.s32.totalorder %s8, 3
    %p152 = pnand %p150, %p151
    %p153 = pneg %p152
    // Predicated region
    $region25: #{block_forward.6} parent=5 // pred_check
      _
    $region26: #{block_forward.6} parent=5 // pred_check_branch
      %155 = sbr.rel (%p152) target = $region28
    $region27: #{block_forward.6} parent=5 // pred_region
      %s156 = ssub.s32 %s8, 1
      %p157 = scmp.lt.s32.totalorder %s18, 1
      %s158 = scalar_select %p157, %s18, 1
      %p159 = scmp.lt.s32.totalorder %s19, 0
      %s160 = scalar_select %p159, %s19, 0
      %s161 = sadd.s32 %s160, %s158
      %s162 = smul.addr %s161, 8
      %s163 = scalar_lea.vmem %s0, %s162
      %p164 = pneg %p55
      %p165 = pneg %p52
      %p166 = scmp.lt.s32.totalorder %s18, 1
      %s167 = scalar_select %p166, %s18, 1
      %p168 = scmp.lt.s32.totalorder %s20, 0
      %s169 = scalar_select %p168, %s20, 0
      %s170 = sadd.s32 %s169, %s167
      %s171 = smul.addr %s170, 8
      %s172 = scalar_lea.vmem %s1, %s171
      %p173 = pneg %p83
      %p174 = pneg %p80
      %p175 = pneg %p111
      %p176 = pneg %p108
      %p177 = scmp.lt.s32.totalorder %s18, 1
      %s178 = scalar_select %p177, %s18, 1
      %p179 = scmp.lt.s32.totalorder %s19, 0
      %s180 = scalar_select %p179, %s19, 0
      %s181 = sadd.s32 %s180, %s178
      %s182 = smul.addr %s181, 8
      %s183 = scalar_lea.vmem %s2, %s182
      %p184 = scmp.lt.s32.totalorder %s18, 1
      %s185 = scalar_select %p184, %s18, 1
      %p186 = scmp.lt.s32.totalorder %s19, 0
      %s187 = scalar_select %p186, %s19, 0
      %s188 = sadd.s32 %s187, %s185
      %s189 = smul.addr %s188, 8
      %s190 = scalar_lea.vmem %s0, %s189
      %p191 = scmp.lt.s32.totalorder %s18, 1
      %s192 = scalar_select %p191, %s18, 1
      %p193 = scmp.lt.s32.totalorder %s20, 0
      %s194 = scalar_select %p193, %s20, 0
      %s195 = sadd.s32 %s194, %s192
      %s196 = smul.addr %s195, 8
      %s197 = scalar_lea.vmem %s1, %s196
      %p198 = scmp.lt.s32.totalorder %s18, 1
      %s199 = scalar_select %p198, %s18, 1
      %p200 = scmp.lt.s32.totalorder %s19, 0
      %s201 = scalar_select %p200, %s19, 0
      %s202 = sadd.s32 %s201, %s199
      %s203 = smul.addr %s202, 8
      %s204 = scalar_lea.vmem %s2, %s203
      %p205 = scmp.eq.s32.totalorder %s20, 0
      // Predicated region
      $region29: #{block_forward.6} parent=27 // pred_check
        %p206 = pneg %p205
      $region30: #{block_forward.6} parent=27 // pred_check_branch
        %208 = sbr.rel (%p206) target = $region32
      $region31: #{block_forward.6} parent=27 // pred_region
        %vm209 = vcmask 7168
        %210 = vst.msk [vmem:[#allocation2] sm:$0xff] %vm209, -inf
        %211 = vst.msk [vmem:[#allocation2 + $0x8] sm:$0xff] %vm209, -inf
        %212 = vst.msk [vmem:[#allocation2 + $0x10] sm:$0xff] %vm209, -inf
        %213 = vst.msk [vmem:[#allocation2 + $0x18] sm:$0xff] %vm209, -inf
        %214 = vst.msk [vmem:[#allocation3] sm:$0xff] %vm209, 0.0
        %215 = vst.msk [vmem:[#allocation3 + $0x8] sm:$0xff] %vm209, 0.0
        %216 = vst.msk [vmem:[#allocation3 + $0x10] sm:$0xff] %vm209, 0.0
        %217 = vst.msk [vmem:[#allocation3 + $0x18] sm:$0xff] %vm209, 0.0
        %vm218 = vcmask 64512
        %219 = vst.msk [vmem:[#allocation4] sm:$0xff] %vm218, 0.0
        %220 = vst.msk [vmem:[#allocation4 + $0x8] sm:$0xff] %vm218, 0.0
        %221 = vst.msk [vmem:[#allocation4 + $0x10] sm:$0xff] %vm218, 0.0
        %222 = vst.msk [vmem:[#allocation4 + $0x18] sm:$0xff] %vm218, 0.0
      $region32: #{block_forward.6} parent=27 // pred_fallthru
        _
      %s223 = smul.u32 %s20, 8
      %s224 = smul.u32 %s19, 8
      %s225 = sadd.s32 %s224, 7
      %p226 = scmp.le.s32.totalorder %s223, %s225
      // Predicated region
      $region33: #{block_forward.6} parent=27 // pred_check
        %p227 = pneg %p226
      $region34: #{block_forward.6} parent=27 // pred_check_branch
        %229 = sbr.rel (%p227) target = $region36
      $region35: #{block_forward.6} parent=27 // pred_region
        %v230 = vlaneseq
        %v231 = vshrl.u32 %v230, 7
        %v232 = vstv %s224
        %v233 = vadd.s32 %v232, %v231
        %v234 = vlaneseq
        %v235 = vand.u32 %v234, 127
        %v236 = vstv %s223
        %v237 = vadd.s32 %v236, %v235
        %vm238 = vcmp.le.s32.totalorder %v237, %v233
        %v239 = vld [vmem:[%s190] sm:$0xff]
        %v240 = vmul.f32 %v239, 0.35355338
        %v241 = vld [vmem:[%s197] sm:$0xff]
        %243 = vrot.lane.b32.xlu0 %v241, 96
        %v244 = vpop.permute.xlu0 %243
        %vm245 = vcmask 64512
        %v247 = vsel %vm245, %v240, 0
        %v249 = vsel %vm245, %v244, 0
        %251 = vmatpush.xpose.msra.mxu0 0.0
        %252 = vmatpush.xpose.msra.mxu0 0.0
        %253 = vmatpush.xpose.msra.mxu0 0.0
        %254 = vmatpush.xpose.msra.mxu0 0.0
        %255 = vmatpush.xpose.msra.mxu0 0.0
        %256 = vmatpush.xpose.msra.mxu0 0.0
        %257 = vmatpush.xpose.msra.mxu0 0.0
        %258 = vmatpush.xpose.msra.mxu0 0.0
        %259 = vmatpush.xpose.msra.mxu0 0.0
        %260 = vmatpush.xpose.msra.mxu0 0.0
        %261 = vmatpush.xpose.msra.mxu0 0.0
        %262 = vmatpush.xpose.msra.mxu0 0.0
        %263 = vmatpush.xpose.msra.mxu0 0.0
        %264 = vmatpush.xpose.msra.mxu0 0.0
        %265 = vmatpush.xpose.msra.mxu0 0.0
        %266 = vmatpush.xpose.msra.mxu0 %v249
        %267 = vmatmul.f32.gmra.mxu0 %v247
        %v268 = vpop.f32.mrf.mxu0
        %v269 = vadd.f32 0.0, %v268
        %270 = vdwg.mxu0
        %v271 = vsel %vm238, %v269, -1e+10
        %v272 = vld [vmem:[#allocation2] sm:$0xff]
        %v273 = vsel %vm245, %v271, -inf
        %274 = vmax.xlane.f32.xlu0 %v273
        %v275 = vpop.xlane.xlu0 %274
        %v276 = vmax.f32 %v272, %v275
        %v277 = vsub.f32 %v272, %v276
        %v278 = vmul.f32 %v277, 1.442695
        %v279 = vpow.pop %v278
        %281 = vset.pattern.permute.xlu0 0
        %282 = vperm.xlu0 %281, %v276
        %v283 = vpop.permute.xlu0 %282
        %v285 = vsub.f32 %v271, %v283
        %v286 = vmul.f32 %v285, 1.442695
        %v287 = vpow.pop %v286
        %v288 = vld [vmem:[#allocation3] sm:$0xff]
        %v289 = vmul.f32 %v279, %v288
        %v290 = vsel %vm245, %v287, 0.0
        %291 = vadd.xlane.f32.xlu0 %v290
        %v292 = vpop.xlane.xlu0 %291
        %v293 = vadd.f32 %v289, %v292
        %vm294 = vcmask 7168
        %295 = vst.msk [vmem:[#allocation3] sm:$0xff] %vm294, %v293
        %296 = vrot.lane.b32.xlu0 %v241, 64
        %v297 = vpop.permute.xlu0 %296
        %v300 = vsel %vm245, %v287, 0
        %302 = vmatpush.msra.mxu0 0.0
        %303 = vmatpush.msra.mxu0 0.0
        %304 = vmatpush.msra.mxu0 0.0
        %305 = vmatpush.msra.mxu0 0.0
        %306 = vmatpush.msra.mxu0 0.0
        %307 = vmatpush.msra.mxu0 0.0
        %308 = vmatpush.msra.mxu0 0.0
        %309 = vmatpush.msra.mxu0 0.0
        %310 = vmatpush.msra.mxu0 0.0
        %311 = vmatpush.msra.mxu0 0.0
        %312 = vmatpush.msra.mxu0 0.0
        %313 = vmatpush.msra.mxu0 0.0
        %314 = vmatpush.msra.mxu0 0.0
        %315 = vmatpush.msra.mxu0 0.0
        %316 = vmatpush.msra.mxu0 0.0
        %317 = vmatpush.msra.mxu0 %v297
        %318 = vmatmul.f32.gmra.mxu0 %v300
        %v319 = vpop.f32.mrf.mxu0
        %v320 = vadd.f32 0.0, %v319
        %321 = vdwg.mxu0
        %v322 = vld [vmem:[#allocation4] sm:$0xff]
        %324 = vset.pattern.permute.xlu0 0
        %325 = vperm.xlu0 %324, %v279
        %v326 = vpop.permute.xlu0 %325
        %v328 = vmul.f32 %v326, %v322
        %v329 = vadd.f32 %v328, %v320
        %330 = vst.msk [vmem:[#allocation4] sm:$0xff] %vm245, %v329
        %331 = vst.msk [vmem:[#allocation2] sm:$0xff] %vm294, %v276
        %v332 = vld [vmem:[%s190] sm:$0xff]
        %v333 = vmul.f32 %v332, 0.35355338
        %v334 = vld [vmem:[%s197] sm:$0xff]
        %336 = vrot.lane.b32.xlu0 %v333, 120
        %v337 = vpop.permute.xlu0 %336
        %339 = vrot.lane.b32.xlu0 %v334, 88
        %v340 = vpop.permute.xlu0 %339
        %v341 = vsel %vm245, %v337, 0
        %v343 = vsel %vm245, %v340, 0
        %345 = vmatpush.xpose.msra.mxu0 0.0
        %346 = vmatpush.xpose.msra.mxu0 0.0
        %347 = vmatpush.xpose.msra.mxu0 0.0
        %348 = vmatpush.xpose.msra.mxu0 0.0
        %349 = vmatpush.xpose.msra.mxu0 0.0
        %350 = vmatpush.xpose.msra.mxu0 0.0
        %351 = vmatpush.xpose.msra.mxu0 0.0
        %352 = vmatpush.xpose.msra.mxu0 0.0
        %353 = vmatpush.xpose.msra.mxu0 0.0
        %354 = vmatpush.xpose.msra.mxu0 0.0
        %355 = vmatpush.xpose.msra.mxu0 0.0
        %356 = vmatpush.xpose.msra.mxu0 0.0
        %357 = vmatpush.xpose.msra.mxu0 0.0
        %358 = vmatpush.xpose.msra.mxu0 0.0
        %359 = vmatpush.xpose.msra.mxu0 0.0
        %360 = vmatpush.xpose.msra.mxu0 %v343
        %361 = vmatmul.f32.gmra.mxu0 %v341
        %v362 = vpop.f32.mrf.mxu0
        %v363 = vadd.f32 0.0, %v362
        %364 = vdwg.mxu0
        %v365 = vsel %vm238, %v363, -1e+10
        %s366 = scalar_lea.vmem [#allocation2], 8
        %v367 = vld [vmem:[%s366] sm:$0xff]
        %v368 = vsel %vm245, %v365, -inf
        %369 = vmax.xlane.f32.xlu0 %v368
        %v370 = vpop.xlane.xlu0 %369
        %v371 = vmax.f32 %v367, %v370
        %v372 = vsub.f32 %v367, %v371
        %v373 = vmul.f32 %v372, 1.442695
        %v374 = vpow.pop %v373
        %376 = vset.pattern.permute.xlu0 0
        %377 = vperm.xlu0 %376, %v371
        %v378 = vpop.permute.xlu0 %377
        %v380 = vsub.f32 %v365, %v378
        %v381 = vmul.f32 %v380, 1.442695
        %v382 = vpow.pop %v381
        %s383 = scalar_lea.vmem [#allocation3], 8
        %v384 = vld [vmem:[%s383] sm:$0xff]
        %v385 = vmul.f32 %v374, %v384
        %v386 = vsel %vm245, %v382, 0.0
        %387 = vadd.xlane.f32.xlu0 %v386
        %v388 = vpop.xlane.xlu0 %387
        %v389 = vadd.f32 %v385, %v388
        %390 = vst.msk [vmem:[%s383] sm:$0xff] %vm294, %v389
        %391 = vrot.lane.b32.xlu0 %v334, 56
        %v392 = vpop.permute.xlu0 %391
        %v395 = vsel %vm245, %v382, 0
        %397 = vmatpush.msra.mxu0 0.0
        %398 = vmatpush.msra.mxu0 0.0
        %399 = vmatpush.msra.mxu0 0.0
        %400 = vmatpush.msra.mxu0 0.0
        %401 = vmatpush.msra.mxu0 0.0
        %402 = vmatpush.msra.mxu0 0.0
        %403 = vmatpush.msra.mxu0 0.0
        %404 = vmatpush.msra.mxu0 0.0
        %405 = vmatpush.msra.mxu0 0.0
        %406 = vmatpush.msra.mxu0 0.0
        %407 = vmatpush.msra.mxu0 0.0
        %408 = vmatpush.msra.mxu0 0.0
        %409 = vmatpush.msra.mxu0 0.0
        %410 = vmatpush.msra.mxu0 0.0
        %411 = vmatpush.msra.mxu0 0.0
        %412 = vmatpush.msra.mxu0 %v392
        %413 = vmatmul.f32.gmra.mxu0 %v395
        %v414 = vpop.f32.mrf.mxu0
        %v415 = vadd.f32 0.0, %v414
        %416 = vdwg.mxu0
        %s417 = scalar_lea.vmem [#allocation4], 8
        %v418 = vld [vmem:[%s417] sm:$0xff]
        %420 = vset.pattern.permute.xlu0 0
        %421 = vperm.xlu0 %420, %v374
        %v422 = vpop.permute.xlu0 %421
        %v424 = vmul.f32 %v422, %v418
        %v425 = vadd.f32 %v424, %v415
        %426 = vst.msk [vmem:[%s417] sm:$0xff] %vm245, %v425
        %427 = vst.msk [vmem:[%s366] sm:$0xff] %vm294, %v371
        %v428 = vld [vmem:[%s190] sm:$0xff]
        %v429 = vmul.f32 %v428, 0.35355338
        %v430 = vld [vmem:[%s197] sm:$0xff]
        %432 = vrot.lane.b32.xlu0 %v429, 112
        %v433 = vpop.permute.xlu0 %432
        %435 = vrot.lane.b32.xlu0 %v430, 80
        %v436 = vpop.permute.xlu0 %435
        %v437 = vsel %vm245, %v433, 0
        %v439 = vsel %vm245, %v436, 0
        %441 = vmatpush.xpose.msra.mxu0 0.0
        %442 = vmatpush.xpose.msra.mxu0 0.0
        %443 = vmatpush.xpose.msra.mxu0 0.0
        %444 = vmatpush.xpose.msra.mxu0 0.0
        %445 = vmatpush.xpose.msra.mxu0 0.0
        %446 = vmatpush.xpose.msra.mxu0 0.0
        %447 = vmatpush.xpose.msra.mxu0 0.0
        %448 = vmatpush.xpose.msra.mxu0 0.0
        %449 = vmatpush.xpose.msra.mxu0 0.0
        %450 = vmatpush.xpose.msra.mxu0 0.0
        %451 = vmatpush.xpose.msra.mxu0 0.0
        %452 = vmatpush.xpose.msra.mxu0 0.0
        %453 = vmatpush.xpose.msra.mxu0 0.0
        %454 = vmatpush.xpose.msra.mxu0 0.0
        %455 = vmatpush.xpose.msra.mxu0 0.0
        %456 = vmatpush.xpose.msra.mxu0 %v439
        %457 = vmatmul.f32.gmra.mxu0 %v437
        %v458 = vpop.f32.mrf.mxu0
        %v459 = vadd.f32 0.0, %v458
        %460 = vdwg.mxu0
        %v461 = vsel %vm238, %v459, -1e+10
        %s462 = scalar_lea.vmem [#allocation2], 16
        %v463 = vld [vmem:[%s462] sm:$0xff]
        %v464 = vsel %vm245, %v461, -inf
        %465 = vmax.xlane.f32.xlu0 %v464
        %v466 = vpop.xlane.xlu0 %465
        %v467 = vmax.f32 %v463, %v466
        %v468 = vsub.f32 %v463, %v467
        %v469 = vmul.f32 %v468, 1.442695
        %v470 = vpow.pop %v469
        %472 = vset.pattern.permute.xlu0 0
        %473 = vperm.xlu0 %472, %v467
        %v474 = vpop.permute.xlu0 %473
        %v476 = vsub.f32 %v461, %v474
        %v477 = vmul.f32 %v476, 1.442695
        %v478 = vpow.pop %v477
        %s479 = scalar_lea.vmem [#allocation3], 16
        %v480 = vld [vmem:[%s479] sm:$0xff]
        %v481 = vmul.f32 %v470, %v480
        %v482 = vsel %vm245, %v478, 0.0
        %483 = vadd.xlane.f32.xlu0 %v482
        %v484 = vpop.xlane.xlu0 %483
        %v485 = vadd.f32 %v481, %v484
        %486 = vst.msk [vmem:[%s479] sm:$0xff] %vm294, %v485
        %487 = vrot.lane.b32.xlu0 %v430, 48
        %v488 = vpop.permute.xlu0 %487
        %v491 = vsel %vm245, %v478, 0
        %493 = vmatpush.msra.mxu0 0.0
        %494 = vmatpush.msra.mxu0 0.0
        %495 = vmatpush.msra.mxu0 0.0
        %496 = vmatpush.msra.mxu0 0.0
        %497 = vmatpush.msra.mxu0 0.0
        %498 = vmatpush.msra.mxu0 0.0
        %499 = vmatpush.msra.mxu0 0.0
        %500 = vmatpush.msra.mxu0 0.0
        %501 = vmatpush.msra.mxu0 0.0
        %502 = vmatpush.msra.mxu0 0.0
        %503 = vmatpush.msra.mxu0 0.0
        %504 = vmatpush.msra.mxu0 0.0
        %505 = vmatpush.msra.mxu0 0.0
        %506 = vmatpush.msra.mxu0 0.0
        %507 = vmatpush.msra.mxu0 0.0
        %508 = vmatpush.msra.mxu0 %v488
        %509 = vmatmul.f32.gmra.mxu0 %v491
        %v510 = vpop.f32.mrf.mxu0
        %v511 = vadd.f32 0.0, %v510
        %512 = vdwg.mxu0
        %s513 = scalar_lea.vmem [#allocation4], 16
        %v514 = vld [vmem:[%s513] sm:$0xff]
        %516 = vset.pattern.permute.xlu0 0
        %517 = vperm.xlu0 %516, %v470
        %v518 = vpop.permute.xlu0 %517
        %v520 = vmul.f32 %v518, %v514
        %v521 = vadd.f32 %v520, %v511
        %522 = vst.msk [vmem:[%s513] sm:$0xff] %vm245, %v521
        %523 = vst.msk [vmem:[%s462] sm:$0xff] %vm294, %v467
        %v524 = vld [vmem:[%s190] sm:$0xff]
        %v525 = vmul.f32 %v524, 0.35355338
        %v526 = vld [vmem:[%s197] sm:$0xff]
        %528 = vrot.lane.b32.xlu0 %v525, 104
        %v529 = vpop.permute.xlu0 %528
        %531 = vrot.lane.b32.xlu0 %v526, 72
        %v532 = vpop.permute.xlu0 %531
        %v533 = vsel %vm245, %v529, 0
        %v535 = vsel %vm245, %v532, 0
        %537 = vmatpush.xpose.msra.mxu0 0.0
        %538 = vmatpush.xpose.msra.mxu0 0.0
        %539 = vmatpush.xpose.msra.mxu0 0.0
        %540 = vmatpush.xpose.msra.mxu0 0.0
        %541 = vmatpush.xpose.msra.mxu0 0.0
        %542 = vmatpush.xpose.msra.mxu0 0.0
        %543 = vmatpush.xpose.msra.mxu0 0.0
        %544 = vmatpush.xpose.msra.mxu0 0.0
        %545 = vmatpush.xpose.msra.mxu0 0.0
        %546 = vmatpush.xpose.msra.mxu0 0.0
        %547 = vmatpush.xpose.msra.mxu0 0.0
        %548 = vmatpush.xpose.msra.mxu0 0.0
        %549 = vmatpush.xpose.msra.mxu0 0.0
        %550 = vmatpush.xpose.msra.mxu0 0.0
        %551 = vmatpush.xpose.msra.mxu0 0.0
        %552 = vmatpush.xpose.msra.mxu0 %v535
        %553 = vmatmul.f32.gmra.mxu0 %v533
        %v554 = vpop.f32.mrf.mxu0
        %v555 = vadd.f32 0.0, %v554
        %556 = vdwg.mxu0
        %v557 = vsel %vm238, %v555, -1e+10
        %s558 = scalar_lea.vmem [#allocation2], 24
        %v559 = vld [vmem:[%s558] sm:$0xff]
        %v560 = vsel %vm245, %v557, -inf
        %561 = vmax.xlane.f32.xlu0 %v560
        %v562 = vpop.xlane.xlu0 %561
        %v563 = vmax.f32 %v559, %v562
        %v564 = vsub.f32 %v559, %v563
        %v565 = vmul.f32 %v564, 1.442695
        %v566 = vpow.pop %v565
        %568 = vset.pattern.permute.xlu0 0
        %569 = vperm.xlu0 %568, %v563
        %v570 = vpop.permute.xlu0 %569
        %v572 = vsub.f32 %v557, %v570
        %v573 = vmul.f32 %v572, 1.442695
        %v574 = vpow.pop %v573
        %s575 = scalar_lea.vmem [#allocation3], 24
        %v576 = vld [vmem:[%s575] sm:$0xff]
        %v577 = vmul.f32 %v566, %v576
        %v578 = vsel %vm245, %v574, 0.0
        %579 = vadd.xlane.f32.xlu0 %v578
        %v580 = vpop.xlane.xlu0 %579
        %v581 = vadd.f32 %v577, %v580
        %582 = vst.msk [vmem:[%s575] sm:$0xff] %vm294, %v581
        %583 = vrot.lane.b32.xlu0 %v526, 40
        %v584 = vpop.permute.xlu0 %583
        %v587 = vsel %vm245, %v574, 0
        %589 = vmatpush.msra.mxu0 0.0
        %590 = vmatpush.msra.mxu0 0.0
        %591 = vmatpush.msra.mxu0 0.0
        %592 = vmatpush.msra.mxu0 0.0
        %593 = vmatpush.msra.mxu0 0.0
        %594 = vmatpush.msra.mxu0 0.0
        %595 = vmatpush.msra.mxu0 0.0
        %596 = vmatpush.msra.mxu0 0.0
        %597 = vmatpush.msra.mxu0 0.0
        %598 = vmatpush.msra.mxu0 0.0
        %599 = vmatpush.msra.mxu0 0.0
        %600 = vmatpush.msra.mxu0 0.0
        %601 = vmatpush.msra.mxu0 0.0
        %602 = vmatpush.msra.mxu0 0.0
        %603 = vmatpush.msra.mxu0 0.0
        %604 = vmatpush.msra.mxu0 %v584
        %605 = vmatmul.f32.gmra.mxu0 %v587
        %v606 = vpop.f32.mrf.mxu0
        %v607 = vadd.f32 0.0, %v606
        %608 = vdwg.mxu0
        %s609 = scalar_lea.vmem [#allocation4], 24
        %v610 = vld [vmem:[%s609] sm:$0xff]
        %612 = vset.pattern.permute.xlu0 0
        %613 = vperm.xlu0 %612, %v566
        %v614 = vpop.permute.xlu0 %613
        %v616 = vmul.f32 %v614, %v610
        %v617 = vadd.f32 %v616, %v607
        %618 = vst.msk [vmem:[%s609] sm:$0xff] %vm245, %v617
        %619 = vst.msk [vmem:[%s558] sm:$0xff] %vm294, %v563
      $region36: #{block_forward.6} parent=27 // pred_fallthru
        _
      // Predicated region
      $region37: #{block_forward.6} parent=27 // pred_check
        %p620 = pneg %p205
      $region38: #{block_forward.6} parent=27 // pred_check_branch
        %622 = sbr.rel (%p620) target = $region40
      $region39: #{block_forward.6} parent=27 // pred_region
        %v623 = vld [vmem:[#allocation3] sm:$0xff]
        %v624 = vrcp.pop %v623
        %v625 = vld [vmem:[#allocation4] sm:$0xff]
        %627 = vset.pattern.permute.xlu0 0
        %628 = vperm.xlu0 %627, %v624
        %v629 = vpop.permute.xlu0 %628
        %v631 = vmul.f32 %v625, %v629
        %vm632 = vcmask 64512
        %633 = vst.msk [vmem:[%s204] sm:$0xff] %vm632, %v631
        %s634 = scalar_lea.vmem [#allocation3], 8
        %v635 = vld [vmem:[%s634] sm:$0xff]
        %v636 = vrcp.pop %v635
        %s637 = scalar_lea.vmem [#allocation4], 8
        %v638 = vld [vmem:[%s637] sm:$0xff]
        %640 = vset.pattern.permute.xlu0 0
        %641 = vperm.xlu0 %640, %v636
        %v642 = vpop.permute.xlu0 %641
        %v644 = vmul.f32 %v638, %v642
        %646 = vrot.lane.b32.xlu0 %v644, 8
        %v647 = vpop.permute.xlu0 %646
        %vm649 = vcmask 130112
        %650 = vst.msk [vmem:[%s204] sm:$0xff] %vm649, %v647
        %s651 = scalar_lea.vmem [#allocation3], 16
        %v652 = vld [vmem:[%s651] sm:$0xff]
        %v653 = vrcp.pop %v652
        %s654 = scalar_lea.vmem [#allocation4], 16
        %v655 = vld [vmem:[%s654] sm:$0xff]
        %657 = vset.pattern.permute.xlu0 0
        %658 = vperm.xlu0 %657, %v653
        %v659 = vpop.permute.xlu0 %658
        %v661 = vmul.f32 %v655, %v659
        %663 = vrot.lane.b32.xlu0 %v661, 16
        %v664 = vpop.permute.xlu0 %663
        %vm666 = vcmask 195712
        %667 = vst.msk [vmem:[%s204] sm:$0xff] %vm666, %v664
        %s668 = scalar_lea.vmem [#allocation3], 24
        %v669 = vld [vmem:[%s668] sm:$0xff]
        %v670 = vrcp.pop %v669
        %s671 = scalar_lea.vmem [#allocation4], 24
        %v672 = vld [vmem:[%s671] sm:$0xff]
        %674 = vset.pattern.permute.xlu0 0
        %675 = vperm.xlu0 %674, %v670
        %v676 = vpop.permute.xlu0 %675
        %v678 = vmul.f32 %v672, %v676
        %680 = vrot.lane.b32.xlu0 %v678, 24
        %v681 = vpop.permute.xlu0 %680
        %vm683 = vcmask 261312
        %684 = vst.msk [vmem:[%s204] sm:$0xff] %vm683, %v681
      $region40: #{block_forward.6} parent=27 // pred_fallthru
        _
      %p685 = scmp.lt.s32.totalorder %s18, 1
      %s686 = scalar_select %p685, %s18, 1
      %p687 = scmp.lt.s32.totalorder %s19, 0
      %s688 = scalar_select %p687, %s19, 0
      %s689 = sadd.s32 %s688, %s686
      %s690 = smul.addr %s689, 8
      %s691 = scalar_lea.vmem %s2, %s690
      // Predicated region
      $region41: #{block_forward.6} parent=27 // pred_check
        %p692 = pneg %p108
      $region42: #{block_forward.6} parent=27 // pred_check_branch
        %694 = sbr.rel (%p692) target = $region44
      $region43: #{block_forward.6} parent=27 // pred_region
        _
      $region44: #{block_forward.6} parent=27 // pred_fallthru
        _
    $region28: #{block_forward.6} parent=5 // pred_fallthru
      _
    %p695 = scmp.le.s32.totalorder 2, %s8
    // Predicated region
    $region45: #{block_forward.6} parent=5 // pred_check
      %p696 = pneg %p695
    $region46: #{block_forward.6} parent=5 // pred_check_branch
      %698 = sbr.rel (%p696) target = $region48
    $region47: #{block_forward.6} parent=5 // pred_region
      %s699 = ssub.s32 %s8, 2
      // Predicated region
      $region49: #{block_forward.6} parent=47 // pred_check
        %p700 = pneg %p114
      $region50: #{block_forward.6} parent=47 // pred_check_branch
        %702 = sbr.rel (%p700) target = $region52
      $region51: #{block_forward.6} parent=47 // pred_region
        %p703 = scmp.lt.s32.totalorder %s21, 1
        %s704 = scalar_select %p703, %s21, 1
        %p705 = scmp.lt.s32.totalorder %s22, 0
        %s706 = scalar_select %p705, %s22, 0
        %s707 = sadd.s32 %s706, %s704
        %s708 = smul.addr %s707, 8
        %s709 = scalar_lea.vmem %s2, %s708
      $region52: #{block_forward.6} parent=47 // pred_fallthru
        _
    $region48: #{block_forward.6} parent=5 // pred_fallthru
      _
  $region6: #{block_forward.6} parent=0 // loop_footer
    %s12 = sadd.s32 1, %s8
  $region7: #{block_forward.6} parent=0 // loop_footer_branch
    %7 = sbr.rel target = $region3
  $region8: #{block_forward.6} parent=0 // loop_exit
    _

// kernel: block_forward.9
$region0: #{block_forward.9}
  #allocation0 [shape = 'u32[]', space=smem, size = 0x4, offset = 0x4, fixed_abs, tag = 'smem constant byte address 0x4 - core index']
  #allocation1 [shape = 'u32[72,128]{1,0:T(1,128)}', space=vmem, size = 0x9000, scoped, tag = 'internal scratch']
  %s0 = inlined_call_operand.vmem [shape: f32[16,128], index: 0, kind: input, shape index: {}]
  %s1 = inlined_call_operand.vmem [shape: f32[128,32], index: 1, kind: input, shape index: {}]
  %s2 = inlined_call_operand.vmem [shape: f32[1,32], index: 2, kind: input, shape index: {}]
  %s3 = inlined_call_operand.vmem [shape: f32[16,32], index: 3, kind: input, shape index: {}]
  %s4 = inlined_call_operand.hbm [shape: f32[16,32], index: 4, kind: output, shape index: {}]
  %s5 = sld [smem:[#allocation0]]
  $region26: #{block_forward.9} parent=0
    _
  %s7 = ssub.s32 1, %s5
  %s8 = scalar_select 0, %s7, %s5
  $region1: #{block_forward.9} parent=0
    #allocation2 [shape = 'u8[8192]{0}', space=vmem, size = 0x2000, scoped, tag = 'output window, operand 0, single buffered']
    #allocation3 [shape = 's32[1]{0}', space=sflag, size = 0x4, scoped, tag = 'scoped memory for block_forward.9']
    %9 = vsyncpa [#allocation3], 0
    // Predicated region
    $region2: #{block_forward.9} parent=1 // pred_check
      _
    $region3: #{block_forward.9} parent=1 // pred_check_branch
      %11 = sbr.rel (0) target = $region5
    $region4: #{block_forward.9} parent=1 // pred_region
      _
    $region5: #{block_forward.9} parent=1 // pred_fallthru
      _
    // Predicated region
    $region6: #{block_forward.9} parent=1 // pred_check
      _
    $region7: #{block_forward.9} parent=1 // pred_check_branch
      %13 = sbr.rel (0) target = $region9
    $region8: #{block_forward.9} parent=1 // pred_region
      _
    $region9: #{block_forward.9} parent=1 // pred_fallthru
      _
    // Predicated region
    $region10: #{block_forward.9} parent=1 // pred_check
      _
    $region11: #{block_forward.9} parent=1 // pred_check_branch
      %15 = sbr.rel (0) target = $region13
    $region12: #{block_forward.9} parent=1 // pred_region
      _
    $region13: #{block_forward.9} parent=1 // pred_fallthru
      _
    // Predicated region
    $region14: #{block_forward.9} parent=1 // pred_check
      _
    $region15: #{block_forward.9} parent=1 // pred_check_branch
      %17 = sbr.rel (0) target = $region17
    $region16: #{block_forward.9} parent=1 // pred_region
      _
    $region17: #{block_forward.9} parent=1 // pred_fallthru
      _
    %v18 = vld [vmem:[%s0] sm:$0xff]
    %v19 = vld [vmem:[%s0 + $0x8] sm:$0xff]
    %v20 = vld [vmem:[%s1] sm:$0xff]
    %v21 = vld [vmem:[%s1 + $0x8] sm:$0xff]
    %v22 = vld [vmem:[%s1 + $0x10] sm:$0xff]
    %v23 = vld [vmem:[%s1 + $0x18] sm:$0xff]
    %v24 = vld [vmem:[%s1 + $0x20] sm:$0xff]
    %v25 = vld [vmem:[%s1 + $0x28] sm:$0xff]
    %v26 = vld [vmem:[%s1 + $0x30] sm:$0xff]
    %v27 = vld [vmem:[%s1 + $0x38] sm:$0xff]
    %v28 = vld [vmem:[%s1 + $0x40] sm:$0xff]
    %v29 = vld [vmem:[%s1 + $0x48] sm:$0xff]
    %v30 = vld [vmem:[%s1 + $0x50] sm:$0xff]
    %v31 = vld [vmem:[%s1 + $0x58] sm:$0xff]
    %v32 = vld [vmem:[%s1 + $0x60] sm:$0xff]
    %v33 = vld [vmem:[%s1 + $0x68] sm:$0xff]
    %v34 = vld [vmem:[%s1 + $0x70] sm:$0xff]
    %v35 = vld [vmem:[%s1 + $0x78] sm:$0xff]
    %v36 = vld [vmem:[%s2] sm:$0x1]
    %v38 = vperm.slane %v36, 0
    %40 = vmatpush.msra.mxu0 %v35
    %41 = vmatpush.msra.mxu0 %v34
    %42 = vmatpush.msra.mxu0 %v33
    %43 = vmatpush.msra.mxu0 %v32
    %44 = vmatpush.msra.mxu0 %v31
    %45 = vmatpush.msra.mxu0 %v30
    %46 = vmatpush.msra.mxu0 %v29
    %47 = vmatpush.msra.mxu0 %v28
    %48 = vmatpush.msra.mxu0 %v27
    %49 = vmatpush.msra.mxu0 %v26
    %50 = vmatpush.msra.mxu0 %v25
    %51 = vmatpush.msra.mxu0 %v24
    %52 = vmatpush.msra.mxu0 %v23
    %53 = vmatpush.msra.mxu0 %v22
    %54 = vmatpush.msra.mxu0 %v21
    %55 = vmatpush.msra.mxu0 %v20
    %56 = vmatmul.f32.gmra.mxu0 %v18
    %v57 = vpop.f32.mrf.mxu0
    %v58 = vadd.f32 %v38, %v57
    %59 = vmatmul.f32.gmra.mxu0 %v19
    %v60 = vpop.f32.mrf.mxu0
    %v61 = vadd.f32 %v38, %v60
    %62 = vdwg.mxu0
    %v63 = vld [vmem:[%s3] sm:$0xff]
    %v64 = vld [vmem:[%s3 + $0x8] sm:$0xff]
    %v65 = vadd.f32 %v58, %v63
    %v66 = vadd.f32 %v61, %v64
    %vm67 = vcmask 261120
    %68 = vst.msk [vmem:[#allocation2] sm:$0xff] %vm67, %v65
    %69 = vst.msk [vmem:[#allocation2 + $0x8] sm:$0xff] %vm67, %v66
    // Predicated region
    $region18: #{block_forward.9} parent=1 // pred_check
      _
    $region19: #{block_forward.9} parent=1 // pred_check_branch
      %71 = sbr.rel (0) target = $region21
    $region20: #{block_forward.9} parent=1 // pred_region
      %73 = vsyncadd [#allocation3], 0
      %s74 = sshll.u32 [#allocation2], 4
      %s75 = int_to_ptr.vmem [resolvable:$true] %s74
      %s76 = sshll.u32 %s4, 4
      %s77 = int_to_ptr.hbm [resolvable:$true] %s76
      %82 = dma.vmem_to_hbm [thread:$0]  %s75, 256, %s77, [#allocation3], 128, 128, 8
    $region21: #{block_forward.9} parent=1 // pred_fallthru
      _
    // Predicated region
    $region22: #{block_forward.9} parent=1 // pred_check
      _
    $region23: #{block_forward.9} parent=1 // pred_check_branch
      %84 = sbr.rel (0) target = $region25
    $region24: #{block_forward.9} parent=1 // pred_region
      %86 = dma.done [#allocation3], 256
    $region25: #{block_forward.9} parent=1 // pred_fallthru
      _
    %87 = vsyncpa [#allocation3], 1

</llo_original>
